<compile_context>
chip_gen: v5e
topology: v5e:2x2
jax: 0.10.0
libtpu: 0.0.40
codegen_flags: <defaults>
</compile_context>

<pallas_src>
import math
import functools

import jax
import jax.numpy as jnp
from jax.experimental import pallas as pl
from jax.experimental.pallas import tpu as pltpu


def _tf_kernel(nhead, head_dim, bblk, seq, approx,
               x_ref, wqkv_ref, bqkv_ref, wo_ref, bo_ref,
               w1_ref, b1_ref, w2_ref, b2_ref,
               g1_ref, be1_ref, g2_ref, be2_ref, o_ref):
    cd = wqkv_ref.dtype                      # MXU input dtype (bf16 or f32)
    E = nhead * head_dim

    x = x_ref[...]                           # (bblk*seq, E) f32
    xc = x.astype(cd)

    # ---- fused QKV in-projection: one (N,E)x(E,3E) MXU matmul ----
    # (softmax scale 1/sqrt(head_dim) pre-folded into the Q columns / bias)
    qkv = jnp.dot(xc, wqkv_ref[...],
                  preferred_element_type=jnp.float32) + bqkv_ref[...]   # (N, 3E) f32

    # ---- split into (bblk*nhead, seq, head_dim), batch index = b*nhead + h ----
    def heads(col_off):
        pieces = []
        for b in range(bblk):
            r0 = b * seq
            for h in range(nhead):
                c0 = col_off + h * head_dim
                pieces.append(qkv[r0:r0 + seq, c0:c0 + head_dim])
        return jnp.stack(pieces, axis=0).astype(cd)

    qh = heads(0)
    kh = heads(E)
    vh = heads(2 * E)

    # ---- all (batch-row, head) pairs at once: scores, softmax, context ----
    s = jnp.einsum("hqd,hkd->hqk", qh, kh,
                   preferred_element_type=jnp.float32)        # (bblk*H, S, S)
    s = s - jnp.max(s, axis=-1, keepdims=True)
    p = jnp.exp(s)
    denom = jnp.sum(p, axis=-1, keepdims=True)
    if approx:
        p = p * pl.reciprocal(denom, approx=True)             # EUP slot
    else:
        p = p / denom                                         # exact path
    ctx = jnp.einsum("hqk,hkd->hqd", p.astype(cd), vh,
                     preferred_element_type=jnp.float32)      # (bblk*H, S, Dh)

    # ---- output projection: head-batched matmul, f32 head-sum per block row ----
    rows = []
    for b in range(bblk):
        ctx_b = ctx[b * nhead:(b + 1) * nhead]                # (H, S, Dh)
        attn_bh = jnp.einsum("hqd,hde->hqe", ctx_b.astype(cd), wo_ref[...],
                             preferred_element_type=jnp.float32)   # (H, S, E)
        rows.append(jnp.sum(attn_bh, axis=0) + bo_ref[...])   # (S, E)
    attn = rows[0] if bblk == 1 else jnp.concatenate(rows, axis=0)   # (N, E)

    def layer_norm(t, g, b):
        mu = jnp.mean(t, axis=-1, keepdims=True)
        ex2 = jnp.mean(t * t, axis=-1, keepdims=True)
        var = ex2 - mu * mu                                   # independent reductions
        return (t - mu) * jax.lax.rsqrt(var + 1e-5) * g + b

    # ---- residual + LayerNorm1 (f32) ----
    y = layer_norm(x + attn, g1_ref[...], be1_ref[...])

    # ---- feed-forward: linear1 -> relu -> linear2 (bf16 MXU, f32 accum) ----
    h1 = jnp.dot(y.astype(cd), w1_ref[...],
                 preferred_element_type=jnp.float32) + b1_ref[...]
    h1 = jnp.maximum(h1, 0.0)
    z = jnp.dot(h1.astype(cd), w2_ref[...],
                preferred_element_type=jnp.float32) + b2_ref[...]

    # ---- residual + LayerNorm2 (f32) ----
    o_ref[...] = layer_norm(y + z, g2_ref[...], be2_ref[...])


def _vmem_limit_bytes():
    """~75% of physical VMEM, capped at 100 MiB (v5e/v6e: ~96 MiB, v7x: 48 MiB)."""
    cap = 128 * 1024 * 1024
    try:
        info = pltpu.get_tpu_info()
        cap = int(getattr(info, "vmem_capacity_bytes", cap))
    except Exception:
        pass
    return max(min(cap * 3 // 4, 100 * 1024 * 1024), 32 * 1024 * 1024)


def tf_forward(src, params, nhead, *, compute_dtype=jnp.bfloat16, block_rows=None):
    """src: (S, B, E) float32 -> (S, B, E) float32."""
    S, B, E = src.shape
    F = params["w1"].shape[1]
    head_dim = E // nhead
    scale = 1.0 / math.sqrt(head_dim)

    # Fused QKV weights; fold the softmax scale into the Q slice (trace time, free).
    wqkv = jnp.concatenate(
        [params["wq"] * scale, params["wk"], params["wv"]], axis=1
    ).astype(compute_dtype)                                        # (E, 3E)
    bqkv = jnp.concatenate(
        [params["bq"] * scale, params["bk"], params["bv"]], axis=1)  # (1, 3E) f32
    # Wo reshaped to (nhead, head_dim, E) for the head-batched output projection.
    wo = params["wo"].reshape(nhead, head_dim, E).astype(compute_dtype)
    w1 = params["w1"].astype(compute_dtype)
    w2 = params["w2"].astype(compute_dtype)

    # Pick how many batch rows to process per grid step (aim for ~128 MXU rows).
    if block_rows is None:
        target = max(1, -(-128 // S))         # ceil(128 / S)
        bblk = 1
        for d in range(1, B + 1):
            if B % d == 0 and d <= target:
                bblk = d
    else:
        bblk = block_rows
    assert B % bblk == 0

    rows = bblk * S
    x_flat = jnp.transpose(src, (1, 0, 2)).reshape(B * S, E)       # rows ordered (b, s)

    approx = jnp.dtype(compute_dtype) == jnp.dtype(jnp.bfloat16)
    kernel = functools.partial(_tf_kernel, nhead, head_dim, bblk, S, approx)

    full = lambda shape: pl.BlockSpec(shape, lambda i: (0,) * len(shape))

    out = pl.pallas_call(
        kernel,
        out_shape=jax.ShapeDtypeStruct((B * S, E), jnp.float32),
        grid_spec=pltpu.PrefetchScalarGridSpec(
            num_scalar_prefetch=0,
            grid=(B // bblk,),
            in_specs=[
                pl.BlockSpec((rows, E), lambda i: (i, 0)),         # x
                full((E, 3 * E)), full((1, 3 * E)),                # Wqkv, bqkv
                full((nhead, head_dim, E)), full((1, E)),          # Wo (per-head), bo
                full((E, F)), full((1, F)),                        # W1, b1
                full((F, E)), full((1, E)),                        # W2, b2
                full((1, E)), full((1, E)),                        # gamma1, beta1
                full((1, E)), full((1, E)),                        # gamma2, beta2
            ],
            out_specs=pl.BlockSpec((rows, E), lambda i: (i, 0)),
        ),
        compiler_params=pltpu.CompilerParams(
            dimension_semantics=("parallel",),
            vmem_limit_bytes=_vmem_limit_bytes()),
    )(x_flat,
      wqkv, bqkv, wo, params["bo"], w1, params["b1"], w2, params["b2"],
      params["g1"], params["be1"], params["g2"], params["be2"])

    return jnp.transpose(out.reshape(B, S, E), (1, 0, 2))          # back to (S, B, E)


def tf_reference(src, params, nhead):
    """Pure-JAX f32 reference (eval-mode PyTorch semantics)."""
    S, B, E = src.shape
    head_dim = E // nhead
    x = jnp.transpose(src, (1, 0, 2))                  # (B, S, E)

    q = x @ params["wq"] + params["bq"]
    k = x @ params["wk"] + params["bk"]
    v = x @ params["wv"] + params["bv"]

    def split(t):
        return t.reshape(B, S, nhead, head_dim).transpose(0, 2, 1, 3)
    qh, kh, vh = split(q), split(k), split(v)
    scores = jnp.einsum("bhqd,bhkd->bhqk", qh, kh) / math.sqrt(head_dim)
    p = jax.nn.softmax(scores, axis=-1)
    oh = jnp.einsum("bhqk,bhkd->bhqd", p, vh)
    attn = oh.transpose(0, 2, 1, 3).reshape(B, S, E) @ params["wo"] + params["bo"]

    def ln(t, g, be):
        mu = jnp.mean(t, axis=-1, keepdims=True)
        var = jnp.mean((t - mu) ** 2, axis=-1, keepdims=True)
        return (t - mu) * jax.lax.rsqrt(var + 1e-5) * g + be

    y = ln(x + attn, params["g1"], params["be1"])
    h1 = jnp.maximum(y @ params["w1"] + params["b1"], 0.0)
    y2 = ln(y + h1 @ params["w2"] + params["b2"], params["g2"], params["be2"])
    return jnp.transpose(y2, (1, 0, 2))


def init_params(key, d_model, nhead, dim_feedforward):
    ks = jax.random.split(key, 9)
    s = 0.05
    # Weights are stored already transposed (in_features, out_features) so the
    # kernel computes x @ W directly (PyTorch stores (out, in) and does x @ W.T).
    return {
        "wq": jax.random.normal(ks[0], (d_model, d_model), jnp.float32) * s,
        "wk": jax.random.normal(ks[1], (d_model, d_model), jnp.float32) * s,
        "wv": jax.random.normal(ks[2], (d_model, d_model), jnp.float32) * s,
        "bq": jax.random.normal(ks[3], (1, d_model), jnp.float32) * s,
        "bk": jax.random.normal(ks[4], (1, d_model), jnp.float32) * s,
        "bv": jax.random.normal(ks[5], (1, d_model), jnp.float32) * s,
        "wo": jax.random.normal(ks[6], (d_model, d_model), jnp.float32) * s,
        "bo": jnp.zeros((1, d_model), jnp.float32),
        "w1": jax.random.normal(ks[7], (d_model, dim_feedforward), jnp.float32) * s,
        "b1": jnp.zeros((1, dim_feedforward), jnp.float32),
        "w2": jax.random.normal(ks[8], (dim_feedforward, d_model), jnp.float32) * s,
        "b2": jnp.zeros((1, d_model), jnp.float32),
        "g1": jnp.ones((1, d_model), jnp.float32),
        "be1": jnp.zeros((1, d_model), jnp.float32),
        "g2": jnp.ones((1, d_model), jnp.float32),
        "be2": jnp.zeros((1, d_model), jnp.float32),
    }


if __name__ == "__main__":
    d_model, nhead, dim_feedforward = 32, 4, 128
    S, B = 8, 2

    key = jax.random.PRNGKey(0)
    k_src, k_par = jax.random.split(key)
    src = jax.random.normal(k_src, (S, B, d_model), jnp.float32)
    params = init_params(k_par, d_model, nhead, dim_feedforward)

    ref = tf_reference(src, params, nhead)

    # Exact-semantics check (f32 MXU inputs, exact softmax divide).
    out_f32 = jax.block_until_ready(
        tf_forward(src, params, nhead, compute_dtype=jnp.float32))
    assert out_f32.shape == (S, B, d_model)
    assert jnp.allclose(out_f32, ref, atol=1e-3, rtol=1e-3), "f32 mismatch vs reference"

    # Performance configuration: bf16 MXU inputs, f32 accumulation, approx recip.
    out = jax.block_until_ready(tf_forward(src, params, nhead))
    assert out.shape == (S, B, d_model)
    assert jnp.allclose(out, ref, atol=2e-2, rtol=2e-2), "bf16 mismatch vs reference"

    print("KERNEL_OK")
</pallas_src>

<mosaic_0001>
module attributes {stable_mosaic.version = 11 : i64} {
  func.func @_tf_kernel(%arg0: i32, %arg1: memref<16x32xf32, #tpu.memory_space<vmem>>, %arg2: memref<32x96xf32, #tpu.memory_space<vmem>>, %arg3: memref<1x96xf32, #tpu.memory_space<vmem>>, %arg4: memref<4x8x32xf32, #tpu.memory_space<vmem>>, %arg5: memref<1x32xf32, #tpu.memory_space<vmem>>, %arg6: memref<32x128xf32, #tpu.memory_space<vmem>>, %arg7: memref<1x128xf32, #tpu.memory_space<vmem>>, %arg8: memref<128x32xf32, #tpu.memory_space<vmem>>, %arg9: memref<1x32xf32, #tpu.memory_space<vmem>>, %arg10: memref<1x32xf32, #tpu.memory_space<vmem>>, %arg11: memref<1x32xf32, #tpu.memory_space<vmem>>, %arg12: memref<1x32xf32, #tpu.memory_space<vmem>>, %arg13: memref<1x32xf32, #tpu.memory_space<vmem>>, %arg14: memref<16x32xf32, #tpu.memory_space<vmem>>) attributes {dimension_semantics = [#tpu.dimension_semantics<parallel>], iteration_bounds = array<i64: 1>, scalar_prefetch = 0 : i64, scratch_operands = 0 : i64, tpu.core_type = #tpu.core_type<tc>, window_params = [{transform_indices = @transform_0, window_bounds = array<i64: 16, 32>}, {pipeline_mode = #tpu.pipeline_mode<synchronous>, transform_indices = @transform_1, window_bounds = array<i64: 32, 96>}, {pipeline_mode = #tpu.pipeline_mode<synchronous>, transform_indices = @transform_2, window_bounds = array<i64: 1, 96>}, {pipeline_mode = #tpu.pipeline_mode<synchronous>, transform_indices = @transform_3, window_bounds = array<i64: 4, 8, 32>}, {pipeline_mode = #tpu.pipeline_mode<synchronous>, transform_indices = @transform_4, window_bounds = array<i64: 1, 32>}, {pipeline_mode = #tpu.pipeline_mode<synchronous>, transform_indices = @transform_5, window_bounds = array<i64: 32, 128>}, {pipeline_mode = #tpu.pipeline_mode<synchronous>, transform_indices = @transform_6, window_bounds = array<i64: 1, 128>}, {pipeline_mode = #tpu.pipeline_mode<synchronous>, transform_indices = @transform_7, window_bounds = array<i64: 128, 32>}, {pipeline_mode = #tpu.pipeline_mode<synchronous>, transform_indices = @transform_8, window_bounds = array<i64: 1, 32>}, {pipeline_mode = #tpu.pipeline_mode<synchronous>, transform_indices = @transform_9, window_bounds = array<i64: 1, 32>}, {pipeline_mode = #tpu.pipeline_mode<synchronous>, transform_indices = @transform_10, window_bounds = array<i64: 1, 32>}, {pipeline_mode = #tpu.pipeline_mode<synchronous>, transform_indices = @transform_11, window_bounds = array<i64: 1, 32>}, {pipeline_mode = #tpu.pipeline_mode<synchronous>, transform_indices = @transform_12, window_bounds = array<i64: 1, 32>}, {transform_indices = @transform_13, window_bounds = array<i64: 16, 32>}]} {
    %c0 = arith.constant 0 : index
    %c0_0 = arith.constant 0 : index
    %0 = vector.load %arg1[%c0, %c0_0] : memref<16x32xf32, #tpu.memory_space<vmem>>, vector<16x32xf32>
    %c0_1 = arith.constant 0 : index
    %c0_2 = arith.constant 0 : index
    %1 = vector.load %arg2[%c0_1, %c0_2] : memref<32x96xf32, #tpu.memory_space<vmem>>, vector<32x96xf32>
    %cst = arith.constant dense<0.000000e+00> : vector<16x96xf32>
    %2 = tpu.matmul %0, %1, %cst {dimension_numbers = #tpu.dot_dimension_numbers<[1], [0], [0], [1], [0, 0, 1, 1], [], []>} : vector<16x32xf32>, vector<32x96xf32>, vector<16x96xf32> -> vector<16x96xf32>
    %c0_3 = arith.constant 0 : index
    %c0_4 = arith.constant 0 : index
    %3 = vector.load %arg3[%c0_3, %c0_4] : memref<1x96xf32, #tpu.memory_space<vmem>>, vector<1x96xf32>
    %4 = vector.broadcast %3 : vector<1x96xf32> to vector<16x96xf32>
    %5 = arith.addf %2, %4 : vector<16x96xf32>
    %6 = vector.extract_strided_slice %5 {offsets = [0, 0], sizes = [8, 8], strides = [1, 1]} : vector<16x96xf32> to vector<8x8xf32>
    %7 = vector.extract_strided_slice %5 {offsets = [0, 8], sizes = [8, 8], strides = [1, 1]} : vector<16x96xf32> to vector<8x8xf32>
    %8 = vector.extract_strided_slice %5 {offsets = [0, 16], sizes = [8, 8], strides = [1, 1]} : vector<16x96xf32> to vector<8x8xf32>
    %9 = vector.extract_strided_slice %5 {offsets = [0, 24], sizes = [8, 8], strides = [1, 1]} : vector<16x96xf32> to vector<8x8xf32>
    %10 = vector.extract_strided_slice %5 {offsets = [8, 0], sizes = [8, 8], strides = [1, 1]} : vector<16x96xf32> to vector<8x8xf32>
    %11 = vector.extract_strided_slice %5 {offsets = [8, 8], sizes = [8, 8], strides = [1, 1]} : vector<16x96xf32> to vector<8x8xf32>
    %12 = vector.extract_strided_slice %5 {offsets = [8, 16], sizes = [8, 8], strides = [1, 1]} : vector<16x96xf32> to vector<8x8xf32>
    %13 = vector.extract_strided_slice %5 {offsets = [8, 24], sizes = [8, 8], strides = [1, 1]} : vector<16x96xf32> to vector<8x8xf32>
    %14 = vector.shape_cast %6 : vector<8x8xf32> to vector<1x8x8xf32>
    %15 = vector.shape_cast %7 : vector<8x8xf32> to vector<1x8x8xf32>
    %16 = vector.shape_cast %8 : vector<8x8xf32> to vector<1x8x8xf32>
    %17 = vector.shape_cast %9 : vector<8x8xf32> to vector<1x8x8xf32>
    %18 = vector.shape_cast %10 : vector<8x8xf32> to vector<1x8x8xf32>
    %19 = vector.shape_cast %11 : vector<8x8xf32> to vector<1x8x8xf32>
    %20 = vector.shape_cast %12 : vector<8x8xf32> to vector<1x8x8xf32>
    %21 = vector.shape_cast %13 : vector<8x8xf32> to vector<1x8x8xf32>
    %22 = tpu.concatenate %14, %15, %16, %17, %18, %19, %20, %21 in 0 : vector<1x8x8xf32>, vector<1x8x8xf32>, vector<1x8x8xf32>, vector<1x8x8xf32>, vector<1x8x8xf32>, vector<1x8x8xf32>, vector<1x8x8xf32>, vector<1x8x8xf32> -> vector<8x8x8xf32>
    %23 = vector.extract_strided_slice %5 {offsets = [0, 32], sizes = [8, 8], strides = [1, 1]} : vector<16x96xf32> to vector<8x8xf32>
    %24 = vector.extract_strided_slice %5 {offsets = [0, 40], sizes = [8, 8], strides = [1, 1]} : vector<16x96xf32> to vector<8x8xf32>
    %25 = vector.extract_strided_slice %5 {offsets = [0, 48], sizes = [8, 8], strides = [1, 1]} : vector<16x96xf32> to vector<8x8xf32>
    %26 = vector.extract_strided_slice %5 {offsets = [0, 56], sizes = [8, 8], strides = [1, 1]} : vector<16x96xf32> to vector<8x8xf32>
    %27 = vector.extract_strided_slice %5 {offsets = [8, 32], sizes = [8, 8], strides = [1, 1]} : vector<16x96xf32> to vector<8x8xf32>
    %28 = vector.extract_strided_slice %5 {offsets = [8, 40], sizes = [8, 8], strides = [1, 1]} : vector<16x96xf32> to vector<8x8xf32>
    %29 = vector.extract_strided_slice %5 {offsets = [8, 48], sizes = [8, 8], strides = [1, 1]} : vector<16x96xf32> to vector<8x8xf32>
    %30 = vector.extract_strided_slice %5 {offsets = [8, 56], sizes = [8, 8], strides = [1, 1]} : vector<16x96xf32> to vector<8x8xf32>
    %31 = vector.shape_cast %23 : vector<8x8xf32> to vector<1x8x8xf32>
    %32 = vector.shape_cast %24 : vector<8x8xf32> to vector<1x8x8xf32>
    %33 = vector.shape_cast %25 : vector<8x8xf32> to vector<1x8x8xf32>
    %34 = vector.shape_cast %26 : vector<8x8xf32> to vector<1x8x8xf32>
    %35 = vector.shape_cast %27 : vector<8x8xf32> to vector<1x8x8xf32>
    %36 = vector.shape_cast %28 : vector<8x8xf32> to vector<1x8x8xf32>
    %37 = vector.shape_cast %29 : vector<8x8xf32> to vector<1x8x8xf32>
    %38 = vector.shape_cast %30 : vector<8x8xf32> to vector<1x8x8xf32>
    %39 = tpu.concatenate %31, %32, %33, %34, %35, %36, %37, %38 in 0 : vector<1x8x8xf32>, vector<1x8x8xf32>, vector<1x8x8xf32>, vector<1x8x8xf32>, vector<1x8x8xf32>, vector<1x8x8xf32>, vector<1x8x8xf32>, vector<1x8x8xf32> -> vector<8x8x8xf32>
    %40 = vector.extract_strided_slice %5 {offsets = [0, 64], sizes = [8, 8], strides = [1, 1]} : vector<16x96xf32> to vector<8x8xf32>
    %41 = vector.extract_strided_slice %5 {offsets = [0, 72], sizes = [8, 8], strides = [1, 1]} : vector<16x96xf32> to vector<8x8xf32>
    %42 = vector.extract_strided_slice %5 {offsets = [0, 80], sizes = [8, 8], strides = [1, 1]} : vector<16x96xf32> to vector<8x8xf32>
    %43 = vector.extract_strided_slice %5 {offsets = [0, 88], sizes = [8, 8], strides = [1, 1]} : vector<16x96xf32> to vector<8x8xf32>
    %44 = vector.extract_strided_slice %5 {offsets = [8, 64], sizes = [8, 8], strides = [1, 1]} : vector<16x96xf32> to vector<8x8xf32>
    %45 = vector.extract_strided_slice %5 {offsets = [8, 72], sizes = [8, 8], strides = [1, 1]} : vector<16x96xf32> to vector<8x8xf32>
    %46 = vector.extract_strided_slice %5 {offsets = [8, 80], sizes = [8, 8], strides = [1, 1]} : vector<16x96xf32> to vector<8x8xf32>
    %47 = vector.extract_strided_slice %5 {offsets = [8, 88], sizes = [8, 8], strides = [1, 1]} : vector<16x96xf32> to vector<8x8xf32>
    %48 = vector.shape_cast %40 : vector<8x8xf32> to vector<1x8x8xf32>
    %49 = vector.shape_cast %41 : vector<8x8xf32> to vector<1x8x8xf32>
    %50 = vector.shape_cast %42 : vector<8x8xf32> to vector<1x8x8xf32>
    %51 = vector.shape_cast %43 : vector<8x8xf32> to vector<1x8x8xf32>
    %52 = vector.shape_cast %44 : vector<8x8xf32> to vector<1x8x8xf32>
    %53 = vector.shape_cast %45 : vector<8x8xf32> to vector<1x8x8xf32>
    %54 = vector.shape_cast %46 : vector<8x8xf32> to vector<1x8x8xf32>
    %55 = vector.shape_cast %47 : vector<8x8xf32> to vector<1x8x8xf32>
    %56 = tpu.concatenate %48, %49, %50, %51, %52, %53, %54, %55 in 0 : vector<1x8x8xf32>, vector<1x8x8xf32>, vector<1x8x8xf32>, vector<1x8x8xf32>, vector<1x8x8xf32>, vector<1x8x8xf32>, vector<1x8x8xf32>, vector<1x8x8xf32> -> vector<8x8x8xf32>
    "tpu.trace_start"() <{level = 10 : i32, message = "hqd,hkd->hqk"}> : () -> ()
    %cst_5 = arith.constant dense<0.000000e+00> : vector<8x8x8xf32>
    %57 = tpu.matmul %22, %39, %cst_5 {dimension_numbers = #tpu.dot_dimension_numbers<[2], [2], [1], [1], [0, 0, 0, 1, 1, 1], [0], [0]>} : vector<8x8x8xf32>, vector<8x8x8xf32>, vector<8x8x8xf32> -> vector<8x8x8xf32>
    "tpu.trace_stop"() : () -> ()
    %cst_6 = arith.constant dense<0xFF800000> : vector<8x8xf32>
    %58 = vector.multi_reduction <maximumf>, %57, %cst_6 [2] : vector<8x8x8xf32> to vector<8x8xf32>
    %59 = vector.shape_cast %58 : vector<8x8xf32> to vector<8x8x1xf32>
    %60 = vector.broadcast %59 : vector<8x8x1xf32> to vector<8x8x8xf32>
    %61 = arith.subf %57, %60 : vector<8x8x8xf32>
    %62 = math.exp %61 : vector<8x8x8xf32>
    %cst_7 = arith.constant dense<0.000000e+00> : vector<8x8xf32>
    %63 = vector.multi_reduction <add>, %62, %cst_7 [2] : vector<8x8x8xf32> to vector<8x8xf32>
    %64 = vector.shape_cast %63 : vector<8x8xf32> to vector<8x8x1xf32>
    %65 = vector.broadcast %64 : vector<8x8x1xf32> to vector<8x8x8xf32>
    %66 = arith.divf %62, %65 : vector<8x8x8xf32>
    "tpu.trace_start"() <{level = 10 : i32, message = "hqk,hkd->hqd"}> : () -> ()
    %cst_8 = arith.constant dense<0.000000e+00> : vector<8x8x8xf32>
    %67 = tpu.matmul %66, %56, %cst_8 {dimension_numbers = #tpu.dot_dimension_numbers<[2], [1], [1], [2], [0, 0, 0, 1, 1, 2], [0], [0]>} : vector<8x8x8xf32>, vector<8x8x8xf32>, vector<8x8x8xf32> -> vector<8x8x8xf32>
    "tpu.trace_stop"() : () -> ()
    %68 = vector.extract_strided_slice %67 {offsets = [0, 0, 0], sizes = [4, 8, 8], strides = [1, 1, 1]} : vector<8x8x8xf32> to vector<4x8x8xf32>
    %c0_9 = arith.constant 0 : index
    %c0_10 = arith.constant 0 : index
    %c0_11 = arith.constant 0 : index
    %69 = vector.load %arg4[%c0_9, %c0_10, %c0_11] : memref<4x8x32xf32, #tpu.memory_space<vmem>>, vector<4x8x32xf32>
    "tpu.trace_start"() <{level = 10 : i32, message = "hqd,hde->hqe"}> : () -> ()
    %cst_12 = arith.constant dense<0.000000e+00> : vector<4x8x32xf32>
    %70 = tpu.matmul %68, %69, %cst_12 {dimension_numbers = #tpu.dot_dimension_numbers<[2], [1], [1], [2], [0, 0, 0, 1, 1, 2], [0], [0]>} : vector<4x8x8xf32>, vector<4x8x32xf32>, vector<4x8x32xf32> -> vector<4x8x32xf32>
    "tpu.trace_stop"() : () -> ()
    %cst_13 = arith.constant dense<0.000000e+00> : vector<8x32xf32>
    %71 = vector.multi_reduction <add>, %70, %cst_13 [0] : vector<4x8x32xf32> to vector<8x32xf32>
    %c0_14 = arith.constant 0 : index
    %c0_15 = arith.constant 0 : index
    %72 = vector.load %arg5[%c0_14, %c0_15] : memref<1x32xf32, #tpu.memory_space<vmem>>, vector<1x32xf32>
    %73 = vector.broadcast %72 : vector<1x32xf32> to vector<8x32xf32>
    %74 = arith.addf %71, %73 : vector<8x32xf32>
    %75 = vector.extract_strided_slice %67 {offsets = [4, 0, 0], sizes = [4, 8, 8], strides = [1, 1, 1]} : vector<8x8x8xf32> to vector<4x8x8xf32>
    %c0_16 = arith.constant 0 : index
    %c0_17 = arith.constant 0 : index
    %c0_18 = arith.constant 0 : index
    %76 = vector.load %arg4[%c0_16, %c0_17, %c0_18] : memref<4x8x32xf32, #tpu.memory_space<vmem>>, vector<4x8x32xf32>
    "tpu.trace_start"() <{level = 10 : i32, message = "hqd,hde->hqe"}> : () -> ()
    %cst_19 = arith.constant dense<0.000000e+00> : vector<4x8x32xf32>
    %77 = tpu.matmul %75, %76, %cst_19 {dimension_numbers = #tpu.dot_dimension_numbers<[2], [1], [1], [2], [0, 0, 0, 1, 1, 2], [0], [0]>} : vector<4x8x8xf32>, vector<4x8x32xf32>, vector<4x8x32xf32> -> vector<4x8x32xf32>
    "tpu.trace_stop"() : () -> ()
    %cst_20 = arith.constant dense<0.000000e+00> : vector<8x32xf32>
    %78 = vector.multi_reduction <add>, %77, %cst_20 [0] : vector<4x8x32xf32> to vector<8x32xf32>
    %c0_21 = arith.constant 0 : index
    %c0_22 = arith.constant 0 : index
    %79 = vector.load %arg5[%c0_21, %c0_22] : memref<1x32xf32, #tpu.memory_space<vmem>>, vector<1x32xf32>
    %80 = vector.broadcast %79 : vector<1x32xf32> to vector<8x32xf32>
    %81 = arith.addf %78, %80 : vector<8x32xf32>
    %82 = tpu.concatenate %74, %81 in 0 : vector<8x32xf32>, vector<8x32xf32> -> vector<16x32xf32>
    %83 = arith.addf %0, %82 : vector<16x32xf32>
    %c0_23 = arith.constant 0 : index
    %c0_24 = arith.constant 0 : index
    %84 = vector.load %arg10[%c0_23, %c0_24] : memref<1x32xf32, #tpu.memory_space<vmem>>, vector<1x32xf32>
    %c0_25 = arith.constant 0 : index
    %c0_26 = arith.constant 0 : index
    %85 = vector.load %arg11[%c0_25, %c0_26] : memref<1x32xf32, #tpu.memory_space<vmem>>, vector<1x32xf32>
    %cst_27 = arith.constant dense<0.000000e+00> : vector<16xf32>
    %86 = vector.multi_reduction <add>, %83, %cst_27 [1] : vector<16x32xf32> to vector<16xf32>
    %87 = vector.shape_cast %86 : vector<16xf32> to vector<16x1xf32>
    %cst_28 = arith.constant 3.200000e+01 : f32
    %88 = vector.broadcast %cst_28 : f32 to vector<16x1xf32>
    %89 = arith.divf %87, %88 : vector<16x1xf32>
    %90 = arith.mulf %83, %83 : vector<16x32xf32>
    %cst_29 = arith.constant dense<0.000000e+00> : vector<16xf32>
    %91 = vector.multi_reduction <add>, %90, %cst_29 [1] : vector<16x32xf32> to vector<16xf32>
    %92 = vector.shape_cast %91 : vector<16xf32> to vector<16x1xf32>
    %cst_30 = arith.constant 3.200000e+01 : f32
    %93 = vector.broadcast %cst_30 : f32 to vector<16x1xf32>
    %94 = arith.divf %92, %93 : vector<16x1xf32>
    %95 = arith.mulf %89, %89 : vector<16x1xf32>
    %96 = arith.subf %94, %95 : vector<16x1xf32>
    %97 = vector.broadcast %89 : vector<16x1xf32> to vector<16x32xf32>
    %98 = arith.subf %83, %97 : vector<16x32xf32>
    %cst_31 = arith.constant 9.99999974E-6 : f32
    %99 = vector.broadcast %cst_31 : f32 to vector<16x1xf32>
    %100 = arith.addf %96, %99 : vector<16x1xf32>
    %101 = math.rsqrt %100 : vector<16x1xf32>
    %102 = vector.broadcast %101 : vector<16x1xf32> to vector<16x32xf32>
    %103 = arith.mulf %98, %102 : vector<16x32xf32>
    %104 = vector.broadcast %84 : vector<1x32xf32> to vector<16x32xf32>
    %105 = arith.mulf %103, %104 : vector<16x32xf32>
    %106 = vector.broadcast %85 : vector<1x32xf32> to vector<16x32xf32>
    %107 = arith.addf %105, %106 : vector<16x32xf32>
    %c0_32 = arith.constant 0 : index
    %c0_33 = arith.constant 0 : index
    %108 = vector.load %arg6[%c0_32, %c0_33] : memref<32x128xf32, #tpu.memory_space<vmem>>, vector<32x128xf32>
    %cst_34 = arith.constant dense<0.000000e+00> : vector<16x128xf32>
    %109 = tpu.matmul %107, %108, %cst_34 {dimension_numbers = #tpu.dot_dimension_numbers<[1], [0], [0], [1], [0, 0, 1, 1], [], []>} : vector<16x32xf32>, vector<32x128xf32>, vector<16x128xf32> -> vector<16x128xf32>
    %c0_35 = arith.constant 0 : index
    %c0_36 = arith.constant 0 : index
    %110 = vector.load %arg7[%c0_35, %c0_36] : memref<1x128xf32, #tpu.memory_space<vmem>>, vector<1x128xf32>
    %111 = vector.broadcast %110 : vector<1x128xf32> to vector<16x128xf32>
    %112 = arith.addf %109, %111 : vector<16x128xf32>
    %cst_37 = arith.constant 0.000000e+00 : f32
    %113 = vector.broadcast %cst_37 : f32 to vector<16x128xf32>
    %114 = arith.maximumf %112, %113 : vector<16x128xf32>
    %c0_38 = arith.constant 0 : index
    %c0_39 = arith.constant 0 : index
    %115 = vector.load %arg8[%c0_38, %c0_39] : memref<128x32xf32, #tpu.memory_space<vmem>>, vector<128x32xf32>
    %cst_40 = arith.constant dense<0.000000e+00> : vector<16x32xf32>
    %116 = tpu.matmul %114, %115, %cst_40 {dimension_numbers = #tpu.dot_dimension_numbers<[1], [0], [0], [1], [0, 0, 1, 1], [], []>} : vector<16x128xf32>, vector<128x32xf32>, vector<16x32xf32> -> vector<16x32xf32>
    %c0_41 = arith.constant 0 : index
    %c0_42 = arith.constant 0 : index
    %117 = vector.load %arg9[%c0_41, %c0_42] : memref<1x32xf32, #tpu.memory_space<vmem>>, vector<1x32xf32>
    %118 = vector.broadcast %117 : vector<1x32xf32> to vector<16x32xf32>
    %119 = arith.addf %116, %118 : vector<16x32xf32>
    %120 = arith.addf %107, %119 : vector<16x32xf32>
    %c0_43 = arith.constant 0 : index
    %c0_44 = arith.constant 0 : index
    %121 = vector.load %arg12[%c0_43, %c0_44] : memref<1x32xf32, #tpu.memory_space<vmem>>, vector<1x32xf32>
    %c0_45 = arith.constant 0 : index
    %c0_46 = arith.constant 0 : index
    %122 = vector.load %arg13[%c0_45, %c0_46] : memref<1x32xf32, #tpu.memory_space<vmem>>, vector<1x32xf32>
    %cst_47 = arith.constant dense<0.000000e+00> : vector<16xf32>
    %123 = vector.multi_reduction <add>, %120, %cst_47 [1] : vector<16x32xf32> to vector<16xf32>
    %124 = vector.shape_cast %123 : vector<16xf32> to vector<16x1xf32>
    %cst_48 = arith.constant 3.200000e+01 : f32
    %125 = vector.broadcast %cst_48 : f32 to vector<16x1xf32>
    %126 = arith.divf %124, %125 : vector<16x1xf32>
    %127 = arith.mulf %120, %120 : vector<16x32xf32>
    %cst_49 = arith.constant dense<0.000000e+00> : vector<16xf32>
    %128 = vector.multi_reduction <add>, %127, %cst_49 [1] : vector<16x32xf32> to vector<16xf32>
    %129 = vector.shape_cast %128 : vector<16xf32> to vector<16x1xf32>
    %cst_50 = arith.constant 3.200000e+01 : f32
    %130 = vector.broadcast %cst_50 : f32 to vector<16x1xf32>
    %131 = arith.divf %129, %130 : vector<16x1xf32>
    %132 = arith.mulf %126, %126 : vector<16x1xf32>
    %133 = arith.subf %131, %132 : vector<16x1xf32>
    %134 = vector.broadcast %126 : vector<16x1xf32> to vector<16x32xf32>
    %135 = arith.subf %120, %134 : vector<16x32xf32>
    %cst_51 = arith.constant 9.99999974E-6 : f32
    %136 = vector.broadcast %cst_51 : f32 to vector<16x1xf32>
    %137 = arith.addf %133, %136 : vector<16x1xf32>
    %138 = math.rsqrt %137 : vector<16x1xf32>
    %139 = vector.broadcast %138 : vector<16x1xf32> to vector<16x32xf32>
    %140 = arith.mulf %135, %139 : vector<16x32xf32>
    %141 = vector.broadcast %121 : vector<1x32xf32> to vector<16x32xf32>
    %142 = arith.mulf %140, %141 : vector<16x32xf32>
    %143 = vector.broadcast %122 : vector<1x32xf32> to vector<16x32xf32>
    %144 = arith.addf %142, %143 : vector<16x32xf32>
    %c0_52 = arith.constant 0 : index
    %c0_53 = arith.constant 0 : index
    %145 = vector.load %arg14[%c0_52, %c0_53] : memref<16x32xf32, #tpu.memory_space<vmem>>, vector<16x32xf32>
    tpu.vector_store %arg14[%c0_52, %c0_53], %144 {strides = array<i32>} : memref<16x32xf32, #tpu.memory_space<vmem>>, vector<16x32xf32>,
    return
  }
  func.func @transform_0(%arg0: i32) -> (i32, i32) {
    %c0_i32 = arith.constant 0 : i32
    %c0_i32_0 = arith.constant 0 : i32
    return %arg0, %c0_i32 : i32, i32
  }
  func.func @transform_1(%arg0: i32) -> (i32, i32) {
    %c0_i32 = arith.constant 0 : i32
    %c0_i32_0 = arith.constant 0 : i32
    %c0_i32_1 = arith.constant 0 : i32
    return %c0_i32, %c0_i32_0 : i32, i32
  }
  func.func @transform_2(%arg0: i32) -> (i32, i32) {
    %c0_i32 = arith.constant 0 : i32
    %c0_i32_0 = arith.constant 0 : i32
    %c0_i32_1 = arith.constant 0 : i32
    return %c0_i32, %c0_i32_0 : i32, i32
  }
  func.func @transform_3(%arg0: i32) -> (i32, i32, i32) {
    %c0_i32 = arith.constant 0 : i32
    %c0_i32_0 = arith.constant 0 : i32
    %c0_i32_1 = arith.constant 0 : i32
    %c0_i32_2 = arith.constant 0 : i32
    return %c0_i32, %c0_i32_0, %c0_i32_1 : i32, i32, i32
  }
  func.func @transform_4(%arg0: i32) -> (i32, i32) {
    %c0_i32 = arith.constant 0 : i32
    %c0_i32_0 = arith.constant 0 : i32
    %c0_i32_1 = arith.constant 0 : i32
    return %c0_i32, %c0_i32_0 : i32, i32
  }
  func.func @transform_5(%arg0: i32) -> (i32, i32) {
    %c0_i32 = arith.constant 0 : i32
    %c0_i32_0 = arith.constant 0 : i32
    %c0_i32_1 = arith.constant 0 : i32
    return %c0_i32, %c0_i32_0 : i32, i32
  }
  func.func @transform_6(%arg0: i32) -> (i32, i32) {
    %c0_i32 = arith.constant 0 : i32
    %c0_i32_0 = arith.constant 0 : i32
    %c0_i32_1 = arith.constant 0 : i32
    return %c0_i32, %c0_i32_0 : i32, i32
  }
  func.func @transform_7(%arg0: i32) -> (i32, i32) {
    %c0_i32 = arith.constant 0 : i32
    %c0_i32_0 = arith.constant 0 : i32
    %c0_i32_1 = arith.constant 0 : i32
    return %c0_i32, %c0_i32_0 : i32, i32
  }
  func.func @transform_8(%arg0: i32) -> (i32, i32) {
    %c0_i32 = arith.constant 0 : i32
    %c0_i32_0 = arith.constant 0 : i32
    %c0_i32_1 = arith.constant 0 : i32
    return %c0_i32, %c0_i32_0 : i32, i32
  }
  func.func @transform_9(%arg0: i32) -> (i32, i32) {
    %c0_i32 = arith.constant 0 : i32
    %c0_i32_0 = arith.constant 0 : i32
    %c0_i32_1 = arith.constant 0 : i32
    return %c0_i32, %c0_i32_0 : i32, i32
  }
  func.func @transform_10(%arg0: i32) -> (i32, i32) {
    %c0_i32 = arith.constant 0 : i32
    %c0_i32_0 = arith.constant 0 : i32
    %c0_i32_1 = arith.constant 0 : i32
    return %c0_i32, %c0_i32_0 : i32, i32
  }
  func.func @transform_11(%arg0: i32) -> (i32, i32) {
    %c0_i32 = arith.constant 0 : i32
    %c0_i32_0 = arith.constant 0 : i32
    %c0_i32_1 = arith.constant 0 : i32
    return %c0_i32, %c0_i32_0 : i32, i32
  }
  func.func @transform_12(%arg0: i32) -> (i32, i32) {
    %c0_i32 = arith.constant 0 : i32
    %c0_i32_0 = arith.constant 0 : i32
    %c0_i32_1 = arith.constant 0 : i32
    return %c0_i32, %c0_i32_0 : i32, i32
  }
  func.func @transform_13(%arg0: i32) -> (i32, i32) {
    %c0_i32 = arith.constant 0 : i32
    %c0_i32_0 = arith.constant 0 : i32
    return %arg0, %c0_i32 : i32, i32
  }
}

</mosaic_0001>

<llo_original>
// kernel: tpu_custom_call.1
$region0: #{tpu_custom_call.1}
  #allocation0 [shape = 'u32[]', space=smem, size = 0x4, offset = 0x4, fixed_abs, tag = 'smem constant byte address 0x4 - core index']
  #allocation1 [shape = 'u32[72,128]{1,0:T(1,128)}', space=vmem, size = 0x9000, scoped, tag = 'internal scratch']
  %s0 = inlined_call_operand.vmem [shape: f32[16,32], index: 0, kind: input, shape index: {}]
  %s1 = inlined_call_operand.vmem [shape: f32[32,96], index: 1, kind: input, shape index: {}]
  %s2 = inlined_call_operand.vmem [shape: f32[1,96], index: 2, kind: input, shape index: {}]
  %s3 = inlined_call_operand.vmem [shape: f32[4,8,32], index: 3, kind: input, shape index: {}]
  %s4 = inlined_call_operand.vmem [shape: f32[1,32], index: 4, kind: input, shape index: {}]
  %s5 = inlined_call_operand.vmem [shape: f32[32,128], index: 5, kind: input, shape index: {}]
  %s6 = inlined_call_operand.vmem [shape: f32[1,128], index: 6, kind: input, shape index: {}]
  %s7 = inlined_call_operand.vmem [shape: f32[128,32], index: 7, kind: input, shape index: {}]
  %s8 = inlined_call_operand.vmem [shape: f32[1,32], index: 8, kind: input, shape index: {}]
  %s9 = inlined_call_operand.vmem [shape: f32[1,32], index: 9, kind: input, shape index: {}]
  %s10 = inlined_call_operand.vmem [shape: f32[1,32], index: 10, kind: input, shape index: {}]
  %s11 = inlined_call_operand.vmem [shape: f32[1,32], index: 11, kind: input, shape index: {}]
  %s12 = inlined_call_operand.vmem [shape: f32[1,32], index: 12, kind: input, shape index: {}]
  %s13 = inlined_call_operand.hbm [shape: f32[16,32], index: 13, kind: output, shape index: {}]
  %s14 = sld [smem:[#allocation0]]
  $region62: #{tpu_custom_call.1} parent=0
    _
  %s16 = ssub.s32 1, %s14
  %s17 = scalar_select 0, %s16, %s14
  $region1: #{tpu_custom_call.1} parent=0
    #allocation2 [shape = 'u8[8192]{0}', space=vmem, size = 0x2000, scoped, tag = 'output window, operand 0, single buffered']
    #allocation3 [shape = 's32[1]{0}', space=sflag, size = 0x4, scoped, tag = 'scoped memory for tpu_custom_call.1']
    %18 = vsyncpa [#allocation3], 0
    // Predicated region
    $region2: #{tpu_custom_call.1} parent=1 // pred_check
      _
    $region3: #{tpu_custom_call.1} parent=1 // pred_check_branch
      %20 = sbr.rel (0) target = $region5
    $region4: #{tpu_custom_call.1} parent=1 // pred_region
      _
    $region5: #{tpu_custom_call.1} parent=1 // pred_fallthru
      _
    // Predicated region
    $region6: #{tpu_custom_call.1} parent=1 // pred_check
      _
    $region7: #{tpu_custom_call.1} parent=1 // pred_check_branch
      %22 = sbr.rel (0) target = $region9
    $region8: #{tpu_custom_call.1} parent=1 // pred_region
      _
    $region9: #{tpu_custom_call.1} parent=1 // pred_fallthru
      _
    // Predicated region
    $region10: #{tpu_custom_call.1} parent=1 // pred_check
      _
    $region11: #{tpu_custom_call.1} parent=1 // pred_check_branch
      %24 = sbr.rel (0) target = $region13
    $region12: #{tpu_custom_call.1} parent=1 // pred_region
      _
    $region13: #{tpu_custom_call.1} parent=1 // pred_fallthru
      _
    // Predicated region
    $region14: #{tpu_custom_call.1} parent=1 // pred_check
      _
    $region15: #{tpu_custom_call.1} parent=1 // pred_check_branch
      %26 = sbr.rel (0) target = $region17
    $region16: #{tpu_custom_call.1} parent=1 // pred_region
      _
    $region17: #{tpu_custom_call.1} parent=1 // pred_fallthru
      _
    // Predicated region
    $region18: #{tpu_custom_call.1} parent=1 // pred_check
      _
    $region19: #{tpu_custom_call.1} parent=1 // pred_check_branch
      %28 = sbr.rel (0) target = $region21
    $region20: #{tpu_custom_call.1} parent=1 // pred_region
      _
    $region21: #{tpu_custom_call.1} parent=1 // pred_fallthru
      _
    // Predicated region
    $region22: #{tpu_custom_call.1} parent=1 // pred_check
      _
    $region23: #{tpu_custom_call.1} parent=1 // pred_check_branch
      %30 = sbr.rel (0) target = $region25
    $region24: #{tpu_custom_call.1} parent=1 // pred_region
      _
    $region25: #{tpu_custom_call.1} parent=1 // pred_fallthru
      _
    // Predicated region
    $region26: #{tpu_custom_call.1} parent=1 // pred_check
      _
    $region27: #{tpu_custom_call.1} parent=1 // pred_check_branch
      %32 = sbr.rel (0) target = $region29
    $region28: #{tpu_custom_call.1} parent=1 // pred_region
      _
    $region29: #{tpu_custom_call.1} parent=1 // pred_fallthru
      _
    // Predicated region
    $region30: #{tpu_custom_call.1} parent=1 // pred_check
      _
    $region31: #{tpu_custom_call.1} parent=1 // pred_check_branch
      %34 = sbr.rel (0) target = $region33
    $region32: #{tpu_custom_call.1} parent=1 // pred_region
      _
    $region33: #{tpu_custom_call.1} parent=1 // pred_fallthru
      _
    // Predicated region
    $region34: #{tpu_custom_call.1} parent=1 // pred_check
      _
    $region35: #{tpu_custom_call.1} parent=1 // pred_check_branch
      %36 = sbr.rel (0) target = $region37
    $region36: #{tpu_custom_call.1} parent=1 // pred_region
      _
    $region37: #{tpu_custom_call.1} parent=1 // pred_fallthru
      _
    // Predicated region
    $region38: #{tpu_custom_call.1} parent=1 // pred_check
      _
    $region39: #{tpu_custom_call.1} parent=1 // pred_check_branch
      %38 = sbr.rel (0) target = $region41
    $region40: #{tpu_custom_call.1} parent=1 // pred_region
      _
    $region41: #{tpu_custom_call.1} parent=1 // pred_fallthru
      _
    // Predicated region
    $region42: #{tpu_custom_call.1} parent=1 // pred_check
      _
    $region43: #{tpu_custom_call.1} parent=1 // pred_check_branch
      %40 = sbr.rel (0) target = $region45
    $region44: #{tpu_custom_call.1} parent=1 // pred_region
      _
    $region45: #{tpu_custom_call.1} parent=1 // pred_fallthru
      _
    // Predicated region
    $region46: #{tpu_custom_call.1} parent=1 // pred_check
      _
    $region47: #{tpu_custom_call.1} parent=1 // pred_check_branch
      %42 = sbr.rel (0) target = $region49
    $region48: #{tpu_custom_call.1} parent=1 // pred_region
      _
    $region49: #{tpu_custom_call.1} parent=1 // pred_fallthru
      _
    // Predicated region
    $region50: #{tpu_custom_call.1} parent=1 // pred_check
      _
    $region51: #{tpu_custom_call.1} parent=1 // pred_check_branch
      %44 = sbr.rel (0) target = $region53
    $region52: #{tpu_custom_call.1} parent=1 // pred_region
      _
    $region53: #{tpu_custom_call.1} parent=1 // pred_fallthru
      _
    %v45 = vld [vmem:[%s0] sm:$0xff]
    %v46 = vld [vmem:[%s0 + $0x8] sm:$0xff]
    %v47 = vld [vmem:[%s1] sm:$0xff]
    %v48 = vld [vmem:[%s1 + $0x8] sm:$0xff]
    %v49 = vld [vmem:[%s1 + $0x10] sm:$0xff]
    %v50 = vld [vmem:[%s1 + $0x18] sm:$0xff]
    %v51 = vld [vmem:[%s2] sm:$0x1]
    %v53 = vperm.slane %v51, 0
    %vm55 = vcmask 261120
    %v57 = vsel %vm55, %v45, 0
    %v60 = vsel %vm55, %v46, 0
    %62 = vmatpush.msra.mxu0 0.0
    %63 = vmatpush.msra.mxu0 0.0
    %64 = vmatpush.msra.mxu0 0.0
    %65 = vmatpush.msra.mxu0 0.0
    %66 = vmatpush.msra.mxu0 0.0
    %67 = vmatpush.msra.mxu0 0.0
    %68 = vmatpush.msra.mxu0 0.0
    %69 = vmatpush.msra.mxu0 0.0
    %70 = vmatpush.msra.mxu0 0.0
    %71 = vmatpush.msra.mxu0 0.0
    %72 = vmatpush.msra.mxu0 0.0
    %73 = vmatpush.msra.mxu0 0.0
    %74 = vmatpush.msra.mxu0 %v50
    %75 = vmatpush.msra.mxu0 %v49
    %76 = vmatpush.msra.mxu0 %v48
    %77 = vmatpush.msra.mxu0 %v47
    %78 = vmatmul.f32.gmra.mxu0 %v57
    %v79 = vpop.f32.mrf.mxu0
    %v80 = vadd.f32 %v53, %v79
    %81 = vmatmul.f32.gmra.mxu0 %v60
    %v82 = vpop.f32.mrf.mxu0
    %v83 = vadd.f32 %v53, %v82
    %84 = vdwg.mxu0
    %86 = vrot.lane.b32.xlu0 %v80, 120
    %v87 = vpop.permute.xlu0 %86
    %88 = vrot.lane.b32.xlu0 %v80, 112
    %v89 = vpop.permute.xlu0 %88
    %90 = vrot.lane.b32.xlu0 %v80, 104
    %v91 = vpop.permute.xlu0 %90
    %93 = vrot.lane.b32.xlu0 %v83, 120
    %v94 = vpop.permute.xlu0 %93
    %95 = vrot.lane.b32.xlu0 %v83, 112
    %v96 = vpop.permute.xlu0 %95
    %97 = vrot.lane.b32.xlu0 %v83, 104
    %v98 = vpop.permute.xlu0 %97
    %99 = vrot.lane.b32.xlu0 %v80, 96
    %v100 = vpop.permute.xlu0 %99
    %vm101 = vcmask 64512
    %v102 = vsel %vm101, %v80, 0
    %v104 = vsel %vm101, %v100, 0
    %106 = vmatpush.xpose.msra.mxu0 0.0
    %107 = vmatpush.xpose.msra.mxu0 0.0
    %108 = vmatpush.xpose.msra.mxu0 0.0
    %109 = vmatpush.xpose.msra.mxu0 0.0
    %110 = vmatpush.xpose.msra.mxu0 0.0
    %111 = vmatpush.xpose.msra.mxu0 0.0
    %112 = vmatpush.xpose.msra.mxu0 0.0
    %113 = vmatpush.xpose.msra.mxu0 0.0
    %114 = vmatpush.xpose.msra.mxu0 0.0
    %115 = vmatpush.xpose.msra.mxu0 0.0
    %116 = vmatpush.xpose.msra.mxu0 0.0
    %117 = vmatpush.xpose.msra.mxu0 0.0
    %118 = vmatpush.xpose.msra.mxu0 0.0
    %119 = vmatpush.xpose.msra.mxu0 0.0
    %120 = vmatpush.xpose.msra.mxu0 0.0
    %121 = vmatpush.xpose.msra.mxu0 %v104
    %122 = vmatmul.f32.gmra.mxu0 %v102
    %v123 = vpop.f32.mrf.mxu0
    %v124 = vadd.f32 0.0, %v123
    %125 = vdwg.mxu0
    %126 = vrot.lane.b32.xlu0 %v87, 96
    %v127 = vpop.permute.xlu0 %126
    %v128 = vsel %vm101, %v87, 0
    %v130 = vsel %vm101, %v127, 0
    %132 = vmatpush.xpose.msra.mxu0 0.0
    %133 = vmatpush.xpose.msra.mxu0 0.0
    %134 = vmatpush.xpose.msra.mxu0 0.0
    %135 = vmatpush.xpose.msra.mxu0 0.0
    %136 = vmatpush.xpose.msra.mxu0 0.0
    %137 = vmatpush.xpose.msra.mxu0 0.0
    %138 = vmatpush.xpose.msra.mxu0 0.0
    %139 = vmatpush.xpose.msra.mxu0 0.0
    %140 = vmatpush.xpose.msra.mxu0 0.0
    %141 = vmatpush.xpose.msra.mxu0 0.0
    %142 = vmatpush.xpose.msra.mxu0 0.0
    %143 = vmatpush.xpose.msra.mxu0 0.0
    %144 = vmatpush.xpose.msra.mxu0 0.0
    %145 = vmatpush.xpose.msra.mxu0 0.0
    %146 = vmatpush.xpose.msra.mxu0 0.0
    %147 = vmatpush.xpose.msra.mxu0 %v130
    %148 = vmatmul.f32.gmra.mxu0 %v128
    %v149 = vpop.f32.mrf.mxu0
    %v150 = vadd.f32 0.0, %v149
    %151 = vdwg.mxu0
    %152 = vrot.lane.b32.xlu0 %v89, 96
    %v153 = vpop.permute.xlu0 %152
    %v154 = vsel %vm101, %v89, 0
    %v156 = vsel %vm101, %v153, 0
    %158 = vmatpush.xpose.msra.mxu0 0.0
    %159 = vmatpush.xpose.msra.mxu0 0.0
    %160 = vmatpush.xpose.msra.mxu0 0.0
    %161 = vmatpush.xpose.msra.mxu0 0.0
    %162 = vmatpush.xpose.msra.mxu0 0.0
    %163 = vmatpush.xpose.msra.mxu0 0.0
    %164 = vmatpush.xpose.msra.mxu0 0.0
    %165 = vmatpush.xpose.msra.mxu0 0.0
    %166 = vmatpush.xpose.msra.mxu0 0.0
    %167 = vmatpush.xpose.msra.mxu0 0.0
    %168 = vmatpush.xpose.msra.mxu0 0.0
    %169 = vmatpush.xpose.msra.mxu0 0.0
    %170 = vmatpush.xpose.msra.mxu0 0.0
    %171 = vmatpush.xpose.msra.mxu0 0.0
    %172 = vmatpush.xpose.msra.mxu0 0.0
    %173 = vmatpush.xpose.msra.mxu0 %v156
    %174 = vmatmul.f32.gmra.mxu0 %v154
    %v175 = vpop.f32.mrf.mxu0
    %v176 = vadd.f32 0.0, %v175
    %177 = vdwg.mxu0
    %178 = vrot.lane.b32.xlu0 %v91, 96
    %v179 = vpop.permute.xlu0 %178
    %v180 = vsel %vm101, %v91, 0
    %v182 = vsel %vm101, %v179, 0
    %184 = vmatpush.xpose.msra.mxu0 0.0
    %185 = vmatpush.xpose.msra.mxu0 0.0
    %186 = vmatpush.xpose.msra.mxu0 0.0
    %187 = vmatpush.xpose.msra.mxu0 0.0
    %188 = vmatpush.xpose.msra.mxu0 0.0
    %189 = vmatpush.xpose.msra.mxu0 0.0
    %190 = vmatpush.xpose.msra.mxu0 0.0
    %191 = vmatpush.xpose.msra.mxu0 0.0
    %192 = vmatpush.xpose.msra.mxu0 0.0
    %193 = vmatpush.xpose.msra.mxu0 0.0
    %194 = vmatpush.xpose.msra.mxu0 0.0
    %195 = vmatpush.xpose.msra.mxu0 0.0
    %196 = vmatpush.xpose.msra.mxu0 0.0
    %197 = vmatpush.xpose.msra.mxu0 0.0
    %198 = vmatpush.xpose.msra.mxu0 0.0
    %199 = vmatpush.xpose.msra.mxu0 %v182
    %200 = vmatmul.f32.gmra.mxu0 %v180
    %v201 = vpop.f32.mrf.mxu0
    %v202 = vadd.f32 0.0, %v201
    %203 = vdwg.mxu0
    %204 = vrot.lane.b32.xlu0 %v83, 96
    %v205 = vpop.permute.xlu0 %204
    %v206 = vsel %vm101, %v83, 0
    %v208 = vsel %vm101, %v205, 0
    %210 = vmatpush.xpose.msra.mxu0 0.0
    %211 = vmatpush.xpose.msra.mxu0 0.0
    %212 = vmatpush.xpose.msra.mxu0 0.0
    %213 = vmatpush.xpose.msra.mxu0 0.0
    %214 = vmatpush.xpose.msra.mxu0 0.0
    %215 = vmatpush.xpose.msra.mxu0 0.0
    %216 = vmatpush.xpose.msra.mxu0 0.0
    %217 = vmatpush.xpose.msra.mxu0 0.0
    %218 = vmatpush.xpose.msra.mxu0 0.0
    %219 = vmatpush.xpose.msra.mxu0 0.0
    %220 = vmatpush.xpose.msra.mxu0 0.0
    %221 = vmatpush.xpose.msra.mxu0 0.0
    %222 = vmatpush.xpose.msra.mxu0 0.0
    %223 = vmatpush.xpose.msra.mxu0 0.0
    %224 = vmatpush.xpose.msra.mxu0 0.0
    %225 = vmatpush.xpose.msra.mxu0 %v208
    %226 = vmatmul.f32.gmra.mxu0 %v206
    %v227 = vpop.f32.mrf.mxu0
    %v228 = vadd.f32 0.0, %v227
    %229 = vdwg.mxu0
    %230 = vrot.lane.b32.xlu0 %v94, 96
    %v231 = vpop.permute.xlu0 %230
    %v232 = vsel %vm101, %v94, 0
    %v234 = vsel %vm101, %v231, 0
    %236 = vmatpush.xpose.msra.mxu0 0.0
    %237 = vmatpush.xpose.msra.mxu0 0.0
    %238 = vmatpush.xpose.msra.mxu0 0.0
    %239 = vmatpush.xpose.msra.mxu0 0.0
    %240 = vmatpush.xpose.msra.mxu0 0.0
    %241 = vmatpush.xpose.msra.mxu0 0.0
    %242 = vmatpush.xpose.msra.mxu0 0.0
    %243 = vmatpush.xpose.msra.mxu0 0.0
    %244 = vmatpush.xpose.msra.mxu0 0.0
    %245 = vmatpush.xpose.msra.mxu0 0.0
    %246 = vmatpush.xpose.msra.mxu0 0.0
    %247 = vmatpush.xpose.msra.mxu0 0.0
    %248 = vmatpush.xpose.msra.mxu0 0.0
    %249 = vmatpush.xpose.msra.mxu0 0.0
    %250 = vmatpush.xpose.msra.mxu0 0.0
    %251 = vmatpush.xpose.msra.mxu0 %v234
    %252 = vmatmul.f32.gmra.mxu0 %v232
    %v253 = vpop.f32.mrf.mxu0
    %v254 = vadd.f32 0.0, %v253
    %255 = vdwg.mxu0
    %256 = vrot.lane.b32.xlu0 %v96, 96
    %v257 = vpop.permute.xlu0 %256
    %v258 = vsel %vm101, %v96, 0
    %v260 = vsel %vm101, %v257, 0
    %262 = vmatpush.xpose.msra.mxu0 0.0
    %263 = vmatpush.xpose.msra.mxu0 0.0
    %264 = vmatpush.xpose.msra.mxu0 0.0
    %265 = vmatpush.xpose.msra.mxu0 0.0
    %266 = vmatpush.xpose.msra.mxu0 0.0
    %267 = vmatpush.xpose.msra.mxu0 0.0
    %268 = vmatpush.xpose.msra.mxu0 0.0
    %269 = vmatpush.xpose.msra.mxu0 0.0
    %270 = vmatpush.xpose.msra.mxu0 0.0
    %271 = vmatpush.xpose.msra.mxu0 0.0
    %272 = vmatpush.xpose.msra.mxu0 0.0
    %273 = vmatpush.xpose.msra.mxu0 0.0
    %274 = vmatpush.xpose.msra.mxu0 0.0
    %275 = vmatpush.xpose.msra.mxu0 0.0
    %276 = vmatpush.xpose.msra.mxu0 0.0
    %277 = vmatpush.xpose.msra.mxu0 %v260
    %278 = vmatmul.f32.gmra.mxu0 %v258
    %v279 = vpop.f32.mrf.mxu0
    %v280 = vadd.f32 0.0, %v279
    %281 = vdwg.mxu0
    %282 = vrot.lane.b32.xlu0 %v98, 96
    %v283 = vpop.permute.xlu0 %282
    %v284 = vsel %vm101, %v98, 0
    %v286 = vsel %vm101, %v283, 0
    %288 = vmatpush.xpose.msra.mxu0 0.0
    %289 = vmatpush.xpose.msra.mxu0 0.0
    %290 = vmatpush.xpose.msra.mxu0 0.0
    %291 = vmatpush.xpose.msra.mxu0 0.0
    %292 = vmatpush.xpose.msra.mxu0 0.0
    %293 = vmatpush.xpose.msra.mxu0 0.0
    %294 = vmatpush.xpose.msra.mxu0 0.0
    %295 = vmatpush.xpose.msra.mxu0 0.0
    %296 = vmatpush.xpose.msra.mxu0 0.0
    %297 = vmatpush.xpose.msra.mxu0 0.0
    %298 = vmatpush.xpose.msra.mxu0 0.0
    %299 = vmatpush.xpose.msra.mxu0 0.0
    %300 = vmatpush.xpose.msra.mxu0 0.0
    %301 = vmatpush.xpose.msra.mxu0 0.0
    %302 = vmatpush.xpose.msra.mxu0 0.0
    %303 = vmatpush.xpose.msra.mxu0 %v286
    %304 = vmatmul.f32.gmra.mxu0 %v284
    %v305 = vpop.f32.mrf.mxu0
    %v306 = vadd.f32 0.0, %v305
    %307 = vdwg.mxu0
    %v308 = vsel %vm101, %v124, -inf
    %309 = vmax.xlane.f32.xlu0 %v308
    %v310 = vpop.xlane.xlu0 %309
    %v311 = vsel %vm101, %v150, -inf
    %312 = vmax.xlane.f32.xlu0 %v311
    %v313 = vpop.xlane.xlu0 %312
    %v314 = vsel %vm101, %v176, -inf
    %315 = vmax.xlane.f32.xlu0 %v314
    %v316 = vpop.xlane.xlu0 %315
    %v317 = vsel %vm101, %v202, -inf
    %318 = vmax.xlane.f32.xlu0 %v317
    %v319 = vpop.xlane.xlu0 %318
    %v320 = vsel %vm101, %v228, -inf
    %321 = vmax.xlane.f32.xlu0 %v320
    %v322 = vpop.xlane.xlu0 %321
    %v323 = vsel %vm101, %v254, -inf
    %324 = vmax.xlane.f32.xlu0 %v323
    %v325 = vpop.xlane.xlu0 %324
    %v326 = vsel %vm101, %v280, -inf
    %327 = vmax.xlane.f32.xlu0 %v326
    %v328 = vpop.xlane.xlu0 %327
    %v329 = vsel %vm101, %v306, -inf
    %330 = vmax.xlane.f32.xlu0 %v329
    %v331 = vpop.xlane.xlu0 %330
    %v332 = vsub.f32 %v124, %v310
    %v333 = vsub.f32 %v150, %v313
    %v334 = vsub.f32 %v176, %v316
    %v335 = vsub.f32 %v202, %v319
    %v336 = vsub.f32 %v228, %v322
    %v337 = vsub.f32 %v254, %v325
    %v338 = vsub.f32 %v280, %v328
    %v339 = vsub.f32 %v306, %v331
    %v340 = vmul.f32 %v332, 1.442695
    %v341 = vpow.pop %v340
    %v342 = vmul.f32 %v333, 1.442695
    %v343 = vpow.pop %v342
    %v344 = vmul.f32 %v334, 1.442695
    %v345 = vpow.pop %v344
    %v346 = vmul.f32 %v335, 1.442695
    %v347 = vpow.pop %v346
    %v348 = vmul.f32 %v336, 1.442695
    %v349 = vpow.pop %v348
    %v350 = vmul.f32 %v337, 1.442695
    %v351 = vpow.pop %v350
    %v352 = vmul.f32 %v338, 1.442695
    %v353 = vpow.pop %v352
    %v354 = vmul.f32 %v339, 1.442695
    %v355 = vpow.pop %v354
    %v356 = vsel %vm101, %v341, 0.0
    %357 = vadd.xlane.f32.xlu0 %v356
    %v358 = vpop.xlane.xlu0 %357
    %v359 = vsel %vm101, %v343, 0.0
    %360 = vadd.xlane.f32.xlu0 %v359
    %v361 = vpop.xlane.xlu0 %360
    %v362 = vsel %vm101, %v345, 0.0
    %363 = vadd.xlane.f32.xlu0 %v362
    %v364 = vpop.xlane.xlu0 %363
    %v365 = vsel %vm101, %v347, 0.0
    %366 = vadd.xlane.f32.xlu0 %v365
    %v367 = vpop.xlane.xlu0 %366
    %v368 = vsel %vm101, %v349, 0.0
    %369 = vadd.xlane.f32.xlu0 %v368
    %v370 = vpop.xlane.xlu0 %369
    %v371 = vsel %vm101, %v351, 0.0
    %372 = vadd.xlane.f32.xlu0 %v371
    %v373 = vpop.xlane.xlu0 %372
    %v374 = vsel %vm101, %v353, 0.0
    %375 = vadd.xlane.f32.xlu0 %v374
    %v376 = vpop.xlane.xlu0 %375
    %v377 = vsel %vm101, %v355, 0.0
    %378 = vadd.xlane.f32.xlu0 %v377
    %v379 = vpop.xlane.xlu0 %378
    %v380 = vrcp.pop %v358
    %v381 = vmul.f32 %v358, %v380
    %v382 = vsub.f32 1.0, %v381
    %v383 = vmul.f32 %v380, %v382
    %v384 = vadd.f32 %v380, %v383
    %vm385 = vweird.f32 %v358
    %vm386 = vweird.f32 %v380
    %vm387 = vmor %vm385, %vm386
    %v388 = vsel %vm387, %v380, %v384
    %v389 = vand.u32 2147483647, %v358
    %vm390 = vcmp.eq.f32.partialorder %v389, 8.507059e+37
    %v391 = vand.u32 %v358, 2147483648
    %v392 = vor.u32 1.1754944e-38, %v391
    %v393 = vsel %vm390, %v392, %v388
    %v394 = vmul.f32 %v341, %v393
    %v395 = vrcp.pop %v361
    %v396 = vmul.f32 %v361, %v395
    %v397 = vsub.f32 1.0, %v396
    %v398 = vmul.f32 %v395, %v397
    %v399 = vadd.f32 %v395, %v398
    %vm400 = vweird.f32 %v361
    %vm401 = vweird.f32 %v395
    %vm402 = vmor %vm400, %vm401
    %v403 = vsel %vm402, %v395, %v399
    %v404 = vand.u32 2147483647, %v361
    %vm405 = vcmp.eq.f32.partialorder %v404, 8.507059e+37
    %v406 = vand.u32 %v361, 2147483648
    %v407 = vor.u32 1.1754944e-38, %v406
    %v408 = vsel %vm405, %v407, %v403
    %v409 = vmul.f32 %v343, %v408
    %v410 = vrcp.pop %v364
    %v411 = vmul.f32 %v364, %v410
    %v412 = vsub.f32 1.0, %v411
    %v413 = vmul.f32 %v410, %v412
    %v414 = vadd.f32 %v410, %v413
    %vm415 = vweird.f32 %v364
    %vm416 = vweird.f32 %v410
    %vm417 = vmor %vm415, %vm416
    %v418 = vsel %vm417, %v410, %v414
    %v419 = vand.u32 2147483647, %v364
    %vm420 = vcmp.eq.f32.partialorder %v419, 8.507059e+37
    %v421 = vand.u32 %v364, 2147483648
    %v422 = vor.u32 1.1754944e-38, %v421
    %v423 = vsel %vm420, %v422, %v418
    %v424 = vmul.f32 %v345, %v423
    %v425 = vrcp.pop %v367
    %v426 = vmul.f32 %v367, %v425
    %v427 = vsub.f32 1.0, %v426
    %v428 = vmul.f32 %v425, %v427
    %v429 = vadd.f32 %v425, %v428
    %vm430 = vweird.f32 %v367
    %vm431 = vweird.f32 %v425
    %vm432 = vmor %vm430, %vm431
    %v433 = vsel %vm432, %v425, %v429
    %v434 = vand.u32 2147483647, %v367
    %vm435 = vcmp.eq.f32.partialorder %v434, 8.507059e+37
    %v436 = vand.u32 %v367, 2147483648
    %v437 = vor.u32 1.1754944e-38, %v436
    %v438 = vsel %vm435, %v437, %v433
    %v439 = vmul.f32 %v347, %v438
    %v440 = vrcp.pop %v370
    %v441 = vmul.f32 %v370, %v440
    %v442 = vsub.f32 1.0, %v441
    %v443 = vmul.f32 %v440, %v442
    %v444 = vadd.f32 %v440, %v443
    %vm445 = vweird.f32 %v370
    %vm446 = vweird.f32 %v440
    %vm447 = vmor %vm445, %vm446
    %v448 = vsel %vm447, %v440, %v444
    %v449 = vand.u32 2147483647, %v370
    %vm450 = vcmp.eq.f32.partialorder %v449, 8.507059e+37
    %v451 = vand.u32 %v370, 2147483648
    %v452 = vor.u32 1.1754944e-38, %v451
    %v453 = vsel %vm450, %v452, %v448
    %v454 = vmul.f32 %v349, %v453
    %v455 = vrcp.pop %v373
    %v456 = vmul.f32 %v373, %v455
    %v457 = vsub.f32 1.0, %v456
    %v458 = vmul.f32 %v455, %v457
    %v459 = vadd.f32 %v455, %v458
    %vm460 = vweird.f32 %v373
    %vm461 = vweird.f32 %v455
    %vm462 = vmor %vm460, %vm461
    %v463 = vsel %vm462, %v455, %v459
    %v464 = vand.u32 2147483647, %v373
    %vm465 = vcmp.eq.f32.partialorder %v464, 8.507059e+37
    %v466 = vand.u32 %v373, 2147483648
    %v467 = vor.u32 1.1754944e-38, %v466
    %v468 = vsel %vm465, %v467, %v463
    %v469 = vmul.f32 %v351, %v468
    %v470 = vrcp.pop %v376
    %v471 = vmul.f32 %v376, %v470
    %v472 = vsub.f32 1.0, %v471
    %v473 = vmul.f32 %v470, %v472
    %v474 = vadd.f32 %v470, %v473
    %vm475 = vweird.f32 %v376
    %vm476 = vweird.f32 %v470
    %vm477 = vmor %vm475, %vm476
    %v478 = vsel %vm477, %v470, %v474
    %v479 = vand.u32 2147483647, %v376
    %vm480 = vcmp.eq.f32.partialorder %v479, 8.507059e+37
    %v481 = vand.u32 %v376, 2147483648
    %v482 = vor.u32 1.1754944e-38, %v481
    %v483 = vsel %vm480, %v482, %v478
    %v484 = vmul.f32 %v353, %v483
    %v485 = vrcp.pop %v379
    %v486 = vmul.f32 %v379, %v485
    %v487 = vsub.f32 1.0, %v486
    %v488 = vmul.f32 %v485, %v487
    %v489 = vadd.f32 %v485, %v488
    %vm490 = vweird.f32 %v379
    %vm491 = vweird.f32 %v485
    %vm492 = vmor %vm490, %vm491
    %v493 = vsel %vm492, %v485, %v489
    %v494 = vand.u32 2147483647, %v379
    %vm495 = vcmp.eq.f32.partialorder %v494, 8.507059e+37
    %v496 = vand.u32 %v379, 2147483648
    %v497 = vor.u32 1.1754944e-38, %v496
    %v498 = vsel %vm495, %v497, %v493
    %v499 = vmul.f32 %v355, %v498
    %500 = vrot.lane.b32.xlu0 %v80, 64
    %v501 = vpop.permute.xlu0 %500
    %v504 = vsel %vm101, %v394, 0
    %506 = vmatpush.msra.mxu0 0.0
    %507 = vmatpush.msra.mxu0 0.0
    %508 = vmatpush.msra.mxu0 0.0
    %509 = vmatpush.msra.mxu0 0.0
    %510 = vmatpush.msra.mxu0 0.0
    %511 = vmatpush.msra.mxu0 0.0
    %512 = vmatpush.msra.mxu0 0.0
    %513 = vmatpush.msra.mxu0 0.0
    %514 = vmatpush.msra.mxu0 0.0
    %515 = vmatpush.msra.mxu0 0.0
    %516 = vmatpush.msra.mxu0 0.0
    %517 = vmatpush.msra.mxu0 0.0
    %518 = vmatpush.msra.mxu0 0.0
    %519 = vmatpush.msra.mxu0 0.0
    %520 = vmatpush.msra.mxu0 0.0
    %521 = vmatpush.msra.mxu0 %v501
    %522 = vmatmul.f32.gmra.mxu0 %v504
    %v523 = vpop.f32.mrf.mxu0
    %v524 = vadd.f32 0.0, %v523
    %525 = vdwg.mxu0
    %526 = vrot.lane.b32.xlu0 %v87, 64
    %v527 = vpop.permute.xlu0 %526
    %v530 = vsel %vm101, %v409, 0
    %532 = vmatpush.msra.mxu0 0.0
    %533 = vmatpush.msra.mxu0 0.0
    %534 = vmatpush.msra.mxu0 0.0
    %535 = vmatpush.msra.mxu0 0.0
    %536 = vmatpush.msra.mxu0 0.0
    %537 = vmatpush.msra.mxu0 0.0
    %538 = vmatpush.msra.mxu0 0.0
    %539 = vmatpush.msra.mxu0 0.0
    %540 = vmatpush.msra.mxu0 0.0
    %541 = vmatpush.msra.mxu0 0.0
    %542 = vmatpush.msra.mxu0 0.0
    %543 = vmatpush.msra.mxu0 0.0
    %544 = vmatpush.msra.mxu0 0.0
    %545 = vmatpush.msra.mxu0 0.0
    %546 = vmatpush.msra.mxu0 0.0
    %547 = vmatpush.msra.mxu0 %v527
    %548 = vmatmul.f32.gmra.mxu0 %v530
    %v549 = vpop.f32.mrf.mxu0
    %v550 = vadd.f32 0.0, %v549
    %551 = vdwg.mxu0
    %552 = vrot.lane.b32.xlu0 %v89, 64
    %v553 = vpop.permute.xlu0 %552
    %v556 = vsel %vm101, %v424, 0
    %558 = vmatpush.msra.mxu0 0.0
    %559 = vmatpush.msra.mxu0 0.0
    %560 = vmatpush.msra.mxu0 0.0
    %561 = vmatpush.msra.mxu0 0.0
    %562 = vmatpush.msra.mxu0 0.0
    %563 = vmatpush.msra.mxu0 0.0
    %564 = vmatpush.msra.mxu0 0.0
    %565 = vmatpush.msra.mxu0 0.0
    %566 = vmatpush.msra.mxu0 0.0
    %567 = vmatpush.msra.mxu0 0.0
    %568 = vmatpush.msra.mxu0 0.0
    %569 = vmatpush.msra.mxu0 0.0
    %570 = vmatpush.msra.mxu0 0.0
    %571 = vmatpush.msra.mxu0 0.0
    %572 = vmatpush.msra.mxu0 0.0
    %573 = vmatpush.msra.mxu0 %v553
    %574 = vmatmul.f32.gmra.mxu0 %v556
    %v575 = vpop.f32.mrf.mxu0
    %v576 = vadd.f32 0.0, %v575
    %577 = vdwg.mxu0
    %578 = vrot.lane.b32.xlu0 %v91, 64
    %v579 = vpop.permute.xlu0 %578
    %v582 = vsel %vm101, %v439, 0
    %584 = vmatpush.msra.mxu0 0.0
    %585 = vmatpush.msra.mxu0 0.0
    %586 = vmatpush.msra.mxu0 0.0
    %587 = vmatpush.msra.mxu0 0.0
    %588 = vmatpush.msra.mxu0 0.0
    %589 = vmatpush.msra.mxu0 0.0
    %590 = vmatpush.msra.mxu0 0.0
    %591 = vmatpush.msra.mxu0 0.0
    %592 = vmatpush.msra.mxu0 0.0
    %593 = vmatpush.msra.mxu0 0.0
    %594 = vmatpush.msra.mxu0 0.0
    %595 = vmatpush.msra.mxu0 0.0
    %596 = vmatpush.msra.mxu0 0.0
    %597 = vmatpush.msra.mxu0 0.0
    %598 = vmatpush.msra.mxu0 0.0
    %599 = vmatpush.msra.mxu0 %v579
    %600 = vmatmul.f32.gmra.mxu0 %v582
    %v601 = vpop.f32.mrf.mxu0
    %v602 = vadd.f32 0.0, %v601
    %603 = vdwg.mxu0
    %604 = vrot.lane.b32.xlu0 %v83, 64
    %v605 = vpop.permute.xlu0 %604
    %v608 = vsel %vm101, %v454, 0
    %610 = vmatpush.msra.mxu0 0.0
    %611 = vmatpush.msra.mxu0 0.0
    %612 = vmatpush.msra.mxu0 0.0
    %613 = vmatpush.msra.mxu0 0.0
    %614 = vmatpush.msra.mxu0 0.0
    %615 = vmatpush.msra.mxu0 0.0
    %616 = vmatpush.msra.mxu0 0.0
    %617 = vmatpush.msra.mxu0 0.0
    %618 = vmatpush.msra.mxu0 0.0
    %619 = vmatpush.msra.mxu0 0.0
    %620 = vmatpush.msra.mxu0 0.0
    %621 = vmatpush.msra.mxu0 0.0
    %622 = vmatpush.msra.mxu0 0.0
    %623 = vmatpush.msra.mxu0 0.0
    %624 = vmatpush.msra.mxu0 0.0
    %625 = vmatpush.msra.mxu0 %v605
    %626 = vmatmul.f32.gmra.mxu0 %v608
    %v627 = vpop.f32.mrf.mxu0
    %v628 = vadd.f32 0.0, %v627
    %629 = vdwg.mxu0
    %630 = vrot.lane.b32.xlu0 %v94, 64
    %v631 = vpop.permute.xlu0 %630
    %v634 = vsel %vm101, %v469, 0
    %636 = vmatpush.msra.mxu0 0.0
    %637 = vmatpush.msra.mxu0 0.0
    %638 = vmatpush.msra.mxu0 0.0
    %639 = vmatpush.msra.mxu0 0.0
    %640 = vmatpush.msra.mxu0 0.0
    %641 = vmatpush.msra.mxu0 0.0
    %642 = vmatpush.msra.mxu0 0.0
    %643 = vmatpush.msra.mxu0 0.0
    %644 = vmatpush.msra.mxu0 0.0
    %645 = vmatpush.msra.mxu0 0.0
    %646 = vmatpush.msra.mxu0 0.0
    %647 = vmatpush.msra.mxu0 0.0
    %648 = vmatpush.msra.mxu0 0.0
    %649 = vmatpush.msra.mxu0 0.0
    %650 = vmatpush.msra.mxu0 0.0
    %651 = vmatpush.msra.mxu0 %v631
    %652 = vmatmul.f32.gmra.mxu0 %v634
    %v653 = vpop.f32.mrf.mxu0
    %v654 = vadd.f32 0.0, %v653
    %655 = vdwg.mxu0
    %656 = vrot.lane.b32.xlu0 %v96, 64
    %v657 = vpop.permute.xlu0 %656
    %v660 = vsel %vm101, %v484, 0
    %662 = vmatpush.msra.mxu0 0.0
    %663 = vmatpush.msra.mxu0 0.0
    %664 = vmatpush.msra.mxu0 0.0
    %665 = vmatpush.msra.mxu0 0.0
    %666 = vmatpush.msra.mxu0 0.0
    %667 = vmatpush.msra.mxu0 0.0
    %668 = vmatpush.msra.mxu0 0.0
    %669 = vmatpush.msra.mxu0 0.0
    %670 = vmatpush.msra.mxu0 0.0
    %671 = vmatpush.msra.mxu0 0.0
    %672 = vmatpush.msra.mxu0 0.0
    %673 = vmatpush.msra.mxu0 0.0
    %674 = vmatpush.msra.mxu0 0.0
    %675 = vmatpush.msra.mxu0 0.0
    %676 = vmatpush.msra.mxu0 0.0
    %677 = vmatpush.msra.mxu0 %v657
    %678 = vmatmul.f32.gmra.mxu0 %v660
    %v679 = vpop.f32.mrf.mxu0
    %v680 = vadd.f32 0.0, %v679
    %681 = vdwg.mxu0
    %682 = vrot.lane.b32.xlu0 %v98, 64
    %v683 = vpop.permute.xlu0 %682
    %v686 = vsel %vm101, %v499, 0
    %688 = vmatpush.msra.mxu0 0.0
    %689 = vmatpush.msra.mxu0 0.0
    %690 = vmatpush.msra.mxu0 0.0
    %691 = vmatpush.msra.mxu0 0.0
    %692 = vmatpush.msra.mxu0 0.0
    %693 = vmatpush.msra.mxu0 0.0
    %694 = vmatpush.msra.mxu0 0.0
    %695 = vmatpush.msra.mxu0 0.0
    %696 = vmatpush.msra.mxu0 0.0
    %697 = vmatpush.msra.mxu0 0.0
    %698 = vmatpush.msra.mxu0 0.0
    %699 = vmatpush.msra.mxu0 0.0
    %700 = vmatpush.msra.mxu0 0.0
    %701 = vmatpush.msra.mxu0 0.0
    %702 = vmatpush.msra.mxu0 0.0
    %703 = vmatpush.msra.mxu0 %v683
    %704 = vmatmul.f32.gmra.mxu0 %v686
    %v705 = vpop.f32.mrf.mxu0
    %v706 = vadd.f32 0.0, %v705
    %707 = vdwg.mxu0
    %v708 = vld [vmem:[%s3] sm:$0xff]
    %v709 = vld [vmem:[%s3 + $0x8] sm:$0xff]
    %v710 = vld [vmem:[%s3 + $0x10] sm:$0xff]
    %v711 = vld [vmem:[%s3 + $0x18] sm:$0xff]
    %v713 = vsel %vm101, %v524, 0
    %715 = vmatpush.msra.mxu0 0.0
    %716 = vmatpush.msra.mxu0 0.0
    %717 = vmatpush.msra.mxu0 0.0
    %718 = vmatpush.msra.mxu0 0.0
    %719 = vmatpush.msra.mxu0 0.0
    %720 = vmatpush.msra.mxu0 0.0
    %721 = vmatpush.msra.mxu0 0.0
    %722 = vmatpush.msra.mxu0 0.0
    %723 = vmatpush.msra.mxu0 0.0
    %724 = vmatpush.msra.mxu0 0.0
    %725 = vmatpush.msra.mxu0 0.0
    %726 = vmatpush.msra.mxu0 0.0
    %727 = vmatpush.msra.mxu0 0.0
    %728 = vmatpush.msra.mxu0 0.0
    %729 = vmatpush.msra.mxu0 0.0
    %730 = vmatpush.msra.mxu0 %v708
    %731 = vmatmul.f32.gmra.mxu0 %v713
    %v732 = vpop.f32.mrf.mxu0
    %v733 = vadd.f32 0.0, %v732
    %734 = vdwg.mxu0
    %v736 = vsel %vm101, %v550, 0
    %738 = vmatpush.msra.mxu0 0.0
    %739 = vmatpush.msra.mxu0 0.0
    %740 = vmatpush.msra.mxu0 0.0
    %741 = vmatpush.msra.mxu0 0.0
    %742 = vmatpush.msra.mxu0 0.0
    %743 = vmatpush.msra.mxu0 0.0
    %744 = vmatpush.msra.mxu0 0.0
    %745 = vmatpush.msra.mxu0 0.0
    %746 = vmatpush.msra.mxu0 0.0
    %747 = vmatpush.msra.mxu0 0.0
    %748 = vmatpush.msra.mxu0 0.0
    %749 = vmatpush.msra.mxu0 0.0
    %750 = vmatpush.msra.mxu0 0.0
    %751 = vmatpush.msra.mxu0 0.0
    %752 = vmatpush.msra.mxu0 0.0
    %753 = vmatpush.msra.mxu0 %v709
    %754 = vmatmul.f32.gmra.mxu0 %v736
    %v755 = vpop.f32.mrf.mxu0
    %v756 = vadd.f32 0.0, %v755
    %757 = vdwg.mxu0
    %v759 = vsel %vm101, %v576, 0
    %761 = vmatpush.msra.mxu0 0.0
    %762 = vmatpush.msra.mxu0 0.0
    %763 = vmatpush.msra.mxu0 0.0
    %764 = vmatpush.msra.mxu0 0.0
    %765 = vmatpush.msra.mxu0 0.0
    %766 = vmatpush.msra.mxu0 0.0
    %767 = vmatpush.msra.mxu0 0.0
    %768 = vmatpush.msra.mxu0 0.0
    %769 = vmatpush.msra.mxu0 0.0
    %770 = vmatpush.msra.mxu0 0.0
    %771 = vmatpush.msra.mxu0 0.0
    %772 = vmatpush.msra.mxu0 0.0
    %773 = vmatpush.msra.mxu0 0.0
    %774 = vmatpush.msra.mxu0 0.0
    %775 = vmatpush.msra.mxu0 0.0
    %776 = vmatpush.msra.mxu0 %v710
    %777 = vmatmul.f32.gmra.mxu0 %v759
    %v778 = vpop.f32.mrf.mxu0
    %v779 = vadd.f32 0.0, %v778
    %780 = vdwg.mxu0
    %v782 = vsel %vm101, %v602, 0
    %784 = vmatpush.msra.mxu0 0.0
    %785 = vmatpush.msra.mxu0 0.0
    %786 = vmatpush.msra.mxu0 0.0
    %787 = vmatpush.msra.mxu0 0.0
    %788 = vmatpush.msra.mxu0 0.0
    %789 = vmatpush.msra.mxu0 0.0
    %790 = vmatpush.msra.mxu0 0.0
    %791 = vmatpush.msra.mxu0 0.0
    %792 = vmatpush.msra.mxu0 0.0
    %793 = vmatpush.msra.mxu0 0.0
    %794 = vmatpush.msra.mxu0 0.0
    %795 = vmatpush.msra.mxu0 0.0
    %796 = vmatpush.msra.mxu0 0.0
    %797 = vmatpush.msra.mxu0 0.0
    %798 = vmatpush.msra.mxu0 0.0
    %799 = vmatpush.msra.mxu0 %v711
    %800 = vmatmul.f32.gmra.mxu0 %v782
    %v801 = vpop.f32.mrf.mxu0
    %v802 = vadd.f32 0.0, %v801
    %803 = vdwg.mxu0
    %v804 = vsel %vm55, %v733, 0.0
    %v805 = vsel %vm55, %v756, 0.0
    %v806 = vadd.f32 %v804, %v805
    %v807 = vsel %vm55, %v779, 0.0
    %v808 = vadd.f32 %v806, %v807
    %v809 = vsel %vm55, %v802, 0.0
    %v810 = vadd.f32 %v808, %v809
    %v811 = vld [vmem:[%s4] sm:$0x1]
    %v813 = vperm.slane %v811, 0
    %v815 = vadd.f32 %v810, %v813
    %v816 = vld [vmem:[%s3] sm:$0xff]
    %v817 = vld [vmem:[%s3 + $0x8] sm:$0xff]
    %v818 = vld [vmem:[%s3 + $0x10] sm:$0xff]
    %v819 = vld [vmem:[%s3 + $0x18] sm:$0xff]
    %v821 = vsel %vm101, %v628, 0
    %823 = vmatpush.msra.mxu0 0.0
    %824 = vmatpush.msra.mxu0 0.0
    %825 = vmatpush.msra.mxu0 0.0
    %826 = vmatpush.msra.mxu0 0.0
    %827 = vmatpush.msra.mxu0 0.0
    %828 = vmatpush.msra.mxu0 0.0
    %829 = vmatpush.msra.mxu0 0.0
    %830 = vmatpush.msra.mxu0 0.0
    %831 = vmatpush.msra.mxu0 0.0
    %832 = vmatpush.msra.mxu0 0.0
    %833 = vmatpush.msra.mxu0 0.0
    %834 = vmatpush.msra.mxu0 0.0
    %835 = vmatpush.msra.mxu0 0.0
    %836 = vmatpush.msra.mxu0 0.0
    %837 = vmatpush.msra.mxu0 0.0
    %838 = vmatpush.msra.mxu0 %v816
    %839 = vmatmul.f32.gmra.mxu0 %v821
    %v840 = vpop.f32.mrf.mxu0
    %v841 = vadd.f32 0.0, %v840
    %842 = vdwg.mxu0
    %v844 = vsel %vm101, %v654, 0
    %846 = vmatpush.msra.mxu0 0.0
    %847 = vmatpush.msra.mxu0 0.0
    %848 = vmatpush.msra.mxu0 0.0
    %849 = vmatpush.msra.mxu0 0.0
    %850 = vmatpush.msra.mxu0 0.0
    %851 = vmatpush.msra.mxu0 0.0
    %852 = vmatpush.msra.mxu0 0.0
    %853 = vmatpush.msra.mxu0 0.0
    %854 = vmatpush.msra.mxu0 0.0
    %855 = vmatpush.msra.mxu0 0.0
    %856 = vmatpush.msra.mxu0 0.0
    %857 = vmatpush.msra.mxu0 0.0
    %858 = vmatpush.msra.mxu0 0.0
    %859 = vmatpush.msra.mxu0 0.0
    %860 = vmatpush.msra.mxu0 0.0
    %861 = vmatpush.msra.mxu0 %v817
    %862 = vmatmul.f32.gmra.mxu0 %v844
    %v863 = vpop.f32.mrf.mxu0
    %v864 = vadd.f32 0.0, %v863
    %865 = vdwg.mxu0
    %v867 = vsel %vm101, %v680, 0
    %869 = vmatpush.msra.mxu0 0.0
    %870 = vmatpush.msra.mxu0 0.0
    %871 = vmatpush.msra.mxu0 0.0
    %872 = vmatpush.msra.mxu0 0.0
    %873 = vmatpush.msra.mxu0 0.0
    %874 = vmatpush.msra.mxu0 0.0
    %875 = vmatpush.msra.mxu0 0.0
    %876 = vmatpush.msra.mxu0 0.0
    %877 = vmatpush.msra.mxu0 0.0
    %878 = vmatpush.msra.mxu0 0.0
    %879 = vmatpush.msra.mxu0 0.0
    %880 = vmatpush.msra.mxu0 0.0
    %881 = vmatpush.msra.mxu0 0.0
    %882 = vmatpush.msra.mxu0 0.0
    %883 = vmatpush.msra.mxu0 0.0
    %884 = vmatpush.msra.mxu0 %v818
    %885 = vmatmul.f32.gmra.mxu0 %v867
    %v886 = vpop.f32.mrf.mxu0
    %v887 = vadd.f32 0.0, %v886
    %888 = vdwg.mxu0
    %v890 = vsel %vm101, %v706, 0
    %892 = vmatpush.msra.mxu0 0.0
    %893 = vmatpush.msra.mxu0 0.0
    %894 = vmatpush.msra.mxu0 0.0
    %895 = vmatpush.msra.mxu0 0.0
    %896 = vmatpush.msra.mxu0 0.0
    %897 = vmatpush.msra.mxu0 0.0
    %898 = vmatpush.msra.mxu0 0.0
    %899 = vmatpush.msra.mxu0 0.0
    %900 = vmatpush.msra.mxu0 0.0
    %901 = vmatpush.msra.mxu0 0.0
    %902 = vmatpush.msra.mxu0 0.0
    %903 = vmatpush.msra.mxu0 0.0
    %904 = vmatpush.msra.mxu0 0.0
    %905 = vmatpush.msra.mxu0 0.0
    %906 = vmatpush.msra.mxu0 0.0
    %907 = vmatpush.msra.mxu0 %v819
    %908 = vmatmul.f32.gmra.mxu0 %v890
    %v909 = vpop.f32.mrf.mxu0
    %v910 = vadd.f32 0.0, %v909
    %911 = vdwg.mxu0
    %v912 = vsel %vm55, %v841, 0.0
    %v913 = vsel %vm55, %v864, 0.0
    %v914 = vadd.f32 %v912, %v913
    %v915 = vsel %vm55, %v887, 0.0
    %v916 = vadd.f32 %v914, %v915
    %v917 = vsel %vm55, %v910, 0.0
    %v918 = vadd.f32 %v916, %v917
    %v919 = vld [vmem:[%s4] sm:$0x1]
    %v921 = vperm.slane %v919, 0
    %v923 = vadd.f32 %v918, %v921
    %v924 = vadd.f32 %v45, %v815
    %v925 = vadd.f32 %v46, %v923
    %v926 = vld [vmem:[%s9] sm:$0x1]
    %v927 = vld [vmem:[%s10] sm:$0x1]
    %v928 = vsel %vm55, %v924, 0.0
    %929 = vadd.xlane.f32.xlu0 %v928
    %v930 = vpop.xlane.xlu0 %929
    %v931 = vsel %vm55, %v925, 0.0
    %932 = vadd.xlane.f32.xlu0 %v931
    %v933 = vpop.xlane.xlu0 %932
    %v934 = vrcp.pop 32.0
    %v935 = vmul.f32 32.0, %v934
    %v936 = vsub.f32 1.0, %v935
    %v937 = vmul.f32 %v934, %v936
    %v938 = vadd.f32 %v934, %v937
    %vm939 = vweird.f32 %v934
    %v940 = vsel %vm939, %v934, %v938
    %v941 = vmul.f32 %v930, %v940
    %v942 = vmul.f32 %v933, %v940
    %v943 = vmul.f32 %v924, %v924
    %v944 = vmul.f32 %v925, %v925
    %v945 = vsel %vm55, %v943, 0.0
    %946 = vadd.xlane.f32.xlu0 %v945
    %v947 = vpop.xlane.xlu0 %946
    %v948 = vsel %vm55, %v944, 0.0
    %949 = vadd.xlane.f32.xlu0 %v948
    %v950 = vpop.xlane.xlu0 %949
    %v951 = vmul.f32 %v947, %v940
    %v952 = vmul.f32 %v950, %v940
    %v953 = vmul.f32 %v941, %v941
    %v954 = vmul.f32 %v942, %v942
    %v955 = vsub.f32 %v951, %v953
    %v956 = vsub.f32 %v952, %v954
    %v957 = vsub.f32 %v924, %v941
    %v958 = vsub.f32 %v925, %v942
    %v959 = vadd.f32 %v955, 1e-05
    %v960 = vadd.f32 %v956, 1e-05
    %v961 = vrsqrt.pop %v959
    %v962 = vmul.f32 %v961, %v959
    %v963 = vmul.f32 %v962, %v961
    %v964 = vmul.f32 0.5, %v963
    %v965 = vsub.f32 1.5, %v964
    %v966 = vmul.f32 %v961, %v965
    %vm967 = vweird.f32 %v959
    %vm968 = vweird.f32 %v961
    %vm969 = vmor %vm967, %vm968
    %v970 = vsel %vm969, %v961, %v966
    %v971 = vrsqrt.pop %v960
    %v972 = vmul.f32 %v971, %v960
    %v973 = vmul.f32 %v972, %v971
    %v974 = vmul.f32 0.5, %v973
    %v975 = vsub.f32 1.5, %v974
    %v976 = vmul.f32 %v971, %v975
    %vm977 = vweird.f32 %v960
    %vm978 = vweird.f32 %v971
    %vm979 = vmor %vm977, %vm978
    %v980 = vsel %vm979, %v971, %v976
    %v981 = vmul.f32 %v957, %v970
    %v982 = vmul.f32 %v958, %v980
    %v984 = vperm.slane %v926, 0
    %v986 = vmul.f32 %v981, %v984
    %v987 = vmul.f32 %v982, %v984
    %v989 = vperm.slane %v927, 0
    %v991 = vadd.f32 %v986, %v989
    %v992 = vadd.f32 %v987, %v989
    %v993 = vld [vmem:[%s5] sm:$0xff]
    %v994 = vld [vmem:[%s5 + $0x8] sm:$0xff]
    %v995 = vld [vmem:[%s5 + $0x10] sm:$0xff]
    %v996 = vld [vmem:[%s5 + $0x18] sm:$0xff]
    %v997 = vld [vmem:[%s6] sm:$0x1]
    %v999 = vperm.slane %v997, 0
    %v1002 = vsel %vm55, %v991, 0
    %v1005 = vsel %vm55, %v992, 0
    %1007 = vmatpush.msra.mxu0 0.0
    %1008 = vmatpush.msra.mxu0 0.0
    %1009 = vmatpush.msra.mxu0 0.0
    %1010 = vmatpush.msra.mxu0 0.0
    %1011 = vmatpush.msra.mxu0 0.0
    %1012 = vmatpush.msra.mxu0 0.0
    %1013 = vmatpush.msra.mxu0 0.0
    %1014 = vmatpush.msra.mxu0 0.0
    %1015 = vmatpush.msra.mxu0 0.0
    %1016 = vmatpush.msra.mxu0 0.0
    %1017 = vmatpush.msra.mxu0 0.0
    %1018 = vmatpush.msra.mxu0 0.0
    %1019 = vmatpush.msra.mxu0 %v996
    %1020 = vmatpush.msra.mxu0 %v995
    %1021 = vmatpush.msra.mxu0 %v994
    %1022 = vmatpush.msra.mxu0 %v993
    %1023 = vmatmul.f32.gmra.mxu0 %v1002
    %v1024 = vpop.f32.mrf.mxu0
    %v1025 = vadd.f32 %v999, %v1024
    %1026 = vmatmul.f32.gmra.mxu0 %v1005
    %v1027 = vpop.f32.mrf.mxu0
    %v1028 = vadd.f32 %v999, %v1027
    %1029 = vdwg.mxu0
    %v1030 = vmax.f32 %v1025, 0.0
    %v1031 = vmax.f32 %v1028, 0.0
    %v1032 = vld [vmem:[%s7] sm:$0xff]
    %v1033 = vld [vmem:[%s7 + $0x8] sm:$0xff]
    %v1034 = vld [vmem:[%s7 + $0x10] sm:$0xff]
    %v1035 = vld [vmem:[%s7 + $0x18] sm:$0xff]
    %v1036 = vld [vmem:[%s7 + $0x20] sm:$0xff]
    %v1037 = vld [vmem:[%s7 + $0x28] sm:$0xff]
    %v1038 = vld [vmem:[%s7 + $0x30] sm:$0xff]
    %v1039 = vld [vmem:[%s7 + $0x38] sm:$0xff]
    %v1040 = vld [vmem:[%s7 + $0x40] sm:$0xff]
    %v1041 = vld [vmem:[%s7 + $0x48] sm:$0xff]
    %v1042 = vld [vmem:[%s7 + $0x50] sm:$0xff]
    %v1043 = vld [vmem:[%s7 + $0x58] sm:$0xff]
    %v1044 = vld [vmem:[%s7 + $0x60] sm:$0xff]
    %v1045 = vld [vmem:[%s7 + $0x68] sm:$0xff]
    %v1046 = vld [vmem:[%s7 + $0x70] sm:$0xff]
    %v1047 = vld [vmem:[%s7 + $0x78] sm:$0xff]
    %v1048 = vld [vmem:[%s8] sm:$0x1]
    %v1050 = vperm.slane %v1048, 0
    %1052 = vmatpush.msra.mxu0 %v1047
    %1053 = vmatpush.msra.mxu0 %v1046
    %1054 = vmatpush.msra.mxu0 %v1045
    %1055 = vmatpush.msra.mxu0 %v1044
    %1056 = vmatpush.msra.mxu0 %v1043
    %1057 = vmatpush.msra.mxu0 %v1042
    %1058 = vmatpush.msra.mxu0 %v1041
    %1059 = vmatpush.msra.mxu0 %v1040
    %1060 = vmatpush.msra.mxu0 %v1039
    %1061 = vmatpush.msra.mxu0 %v1038
    %1062 = vmatpush.msra.mxu0 %v1037
    %1063 = vmatpush.msra.mxu0 %v1036
    %1064 = vmatpush.msra.mxu0 %v1035
    %1065 = vmatpush.msra.mxu0 %v1034
    %1066 = vmatpush.msra.mxu0 %v1033
    %1067 = vmatpush.msra.mxu0 %v1032
    %1068 = vmatmul.f32.gmra.mxu0 %v1030
    %v1069 = vpop.f32.mrf.mxu0
    %v1070 = vadd.f32 %v1050, %v1069
    %1071 = vmatmul.f32.gmra.mxu0 %v1031
    %v1072 = vpop.f32.mrf.mxu0
    %v1073 = vadd.f32 %v1050, %v1072
    %1074 = vdwg.mxu0
    %v1075 = vadd.f32 %v991, %v1070
    %v1076 = vadd.f32 %v992, %v1073
    %v1077 = vld [vmem:[%s11] sm:$0x1]
    %v1078 = vld [vmem:[%s12] sm:$0x1]
    %v1079 = vsel %vm55, %v1075, 0.0
    %1080 = vadd.xlane.f32.xlu0 %v1079
    %v1081 = vpop.xlane.xlu0 %1080
    %v1082 = vsel %vm55, %v1076, 0.0
    %1083 = vadd.xlane.f32.xlu0 %v1082
    %v1084 = vpop.xlane.xlu0 %1083
    %v1085 = vmul.f32 %v1081, %v940
    %v1086 = vmul.f32 %v1084, %v940
    %v1087 = vmul.f32 %v1075, %v1075
    %v1088 = vmul.f32 %v1076, %v1076
    %v1089 = vsel %vm55, %v1087, 0.0
    %1090 = vadd.xlane.f32.xlu0 %v1089
    %v1091 = vpop.xlane.xlu0 %1090
    %v1092 = vsel %vm55, %v1088, 0.0
    %1093 = vadd.xlane.f32.xlu0 %v1092
    %v1094 = vpop.xlane.xlu0 %1093
    %v1095 = vmul.f32 %v1091, %v940
    %v1096 = vmul.f32 %v1094, %v940
    %v1097 = vmul.f32 %v1085, %v1085
    %v1098 = vmul.f32 %v1086, %v1086
    %v1099 = vsub.f32 %v1095, %v1097
    %v1100 = vsub.f32 %v1096, %v1098
    %v1101 = vsub.f32 %v1075, %v1085
    %v1102 = vsub.f32 %v1076, %v1086
    %v1103 = vadd.f32 %v1099, 1e-05
    %v1104 = vadd.f32 %v1100, 1e-05
    %v1105 = vrsqrt.pop %v1103
    %v1106 = vmul.f32 %v1105, %v1103
    %v1107 = vmul.f32 %v1106, %v1105
    %v1108 = vmul.f32 0.5, %v1107
    %v1109 = vsub.f32 1.5, %v1108
    %v1110 = vmul.f32 %v1105, %v1109
    %vm1111 = vweird.f32 %v1103
    %vm1112 = vweird.f32 %v1105
    %vm1113 = vmor %vm1111, %vm1112
    %v1114 = vsel %vm1113, %v1105, %v1110
    %v1115 = vrsqrt.pop %v1104
    %v1116 = vmul.f32 %v1115, %v1104
    %v1117 = vmul.f32 %v1116, %v1115
    %v1118 = vmul.f32 0.5, %v1117
    %v1119 = vsub.f32 1.5, %v1118
    %v1120 = vmul.f32 %v1115, %v1119
    %vm1121 = vweird.f32 %v1104
    %vm1122 = vweird.f32 %v1115
    %vm1123 = vmor %vm1121, %vm1122
    %v1124 = vsel %vm1123, %v1115, %v1120
    %v1125 = vmul.f32 %v1101, %v1114
    %v1126 = vmul.f32 %v1102, %v1124
    %v1128 = vperm.slane %v1077, 0
    %v1130 = vmul.f32 %v1125, %v1128
    %v1131 = vmul.f32 %v1126, %v1128
    %v1133 = vperm.slane %v1078, 0
    %v1135 = vadd.f32 %v1130, %v1133
    %v1136 = vadd.f32 %v1131, %v1133
    %1137 = vst.msk [vmem:[#allocation2] sm:$0xff] %vm55, %v1135
    %1138 = vst.msk [vmem:[#allocation2 + $0x8] sm:$0xff] %vm55, %v1136
    // Predicated region
    $region54: #{tpu_custom_call.1} parent=1 // pred_check
      _
    $region55: #{tpu_custom_call.1} parent=1 // pred_check_branch
      %1140 = sbr.rel (0) target = $region57
    $region56: #{tpu_custom_call.1} parent=1 // pred_region
      %1142 = vsyncadd [#allocation3], 0
      %s1143 = sshll.u32 [#allocation2], 4
      %s1144 = int_to_ptr.vmem [resolvable:$true] %s1143
      %s1145 = sshll.u32 %s13, 4
      %s1146 = int_to_ptr.hbm [resolvable:$true] %s1145
      %1151 = dma.vmem_to_hbm [thread:$0]  %s1144, 256, %s1146, [#allocation3], 128, 128, 8
    $region57: #{tpu_custom_call.1} parent=1 // pred_fallthru
      _
    // Predicated region
    $region58: #{tpu_custom_call.1} parent=1 // pred_check
      _
    $region59: #{tpu_custom_call.1} parent=1 // pred_check_branch
      %1153 = sbr.rel (0) target = $region61
    $region60: #{tpu_custom_call.1} parent=1 // pred_region
      %1155 = dma.done [#allocation3], 256
    $region61: #{tpu_custom_call.1} parent=1 // pred_fallthru
      _
    %1156 = vsyncpa [#allocation3], 1

</llo_original>
